<compile_context>
chip_gen: v7x
topology: tpu7x:2x2x1
jax: 0.10.0
libtpu: 0.0.40
codegen_flags: <defaults>
</compile_context>

<pallas_src>
import math
from functools import partial

import jax
import jax.numpy as jnp
from jax.experimental import pallas as pl
from jax.experimental.pallas import tpu as pltpu

NEG_INF = -1e30  # large negative additive mask (exp underflows to exactly 0)


def _flash_mha_kernel(*refs, num_heads, masking, has_key_mask, tl, ts,
                      approx_recip, compute_dtype):
    it = iter(refs)
    q_ref = next(it)                                  # (1, NH, TL, hd)  cd
    k_ref = next(it)                                  # (1, NH, TS, hd)  cd
    v_ref = next(it)                                  # (1, NH, TS, hd)  cd
    kpm_ref = next(it) if has_key_mask else None      # (1, 1, TS)       f32
    wo_ref = next(it)                                 # (NH, hd, H)      cd
    bo_ref = next(it)                                 # (1, H)           f32
    o_ref = next(it)                                  # (1, TL, H)       out dtype
    m_scr = next(it)                                  # (NH, TL, 1)      f32
    d_scr = next(it)                                  # (NH, TL, 1)      f32
    acc_scr = next(it)                                # (NH, TL, hd)     f32

    l = pl.program_id(1)
    ks = pl.program_id(2)
    ns = pl.num_programs(2)
    cd = compute_dtype

    @pl.when(ks == 0)
    def _init():
        m_scr[...] = jnp.full(m_scr.shape, -jnp.inf, dtype=m_scr.dtype)
        d_scr[...] = jnp.zeros(d_scr.shape, dtype=d_scr.dtype)
        acc_scr[...] = jnp.zeros(acc_scr.shape, dtype=acc_scr.dtype)

    def process(diagonal_tile):
        # All heads in one batched MXU pass: (NH, TL, TS) f32 scores.
        s = jnp.einsum("htd,hsd->hts", q_ref[0], k_ref[0],
                       preferred_element_type=jnp.float32)
        if has_key_mask:
            s = s + kpm_ref[0]                        # (1, TS) additive bias
        if diagonal_tile:
            # ks == l and TS == TL here, so global (col > row) == local (j > i).
            row = jax.lax.broadcasted_iota(jnp.int32, (tl, ts), 0)
            col = jax.lax.broadcasted_iota(jnp.int32, (tl, ts), 1)
            s = s + jnp.where(col > row, NEG_INF, 0.0)
        m_prev = m_scr[...]
        m_new = jnp.maximum(m_prev, jnp.max(s, axis=-1, keepdims=True))
        alpha = jnp.exp(m_prev - m_new)
        p = jnp.exp(s - m_new)                        # unnormalized probs, f32
        d_scr[...] = alpha * d_scr[...] + jnp.sum(p, axis=-1, keepdims=True)
        acc_scr[...] = alpha * acc_scr[...] + jnp.einsum(
            "hts,hsd->htd", p.astype(cd), v_ref[0],
            preferred_element_type=jnp.float32)
        m_scr[...] = m_new

    if masking:
        @pl.when(ks < l)                              # strictly below diagonal
        def _below():
            process(False)

        @pl.when(ks == l)                             # diagonal tile
        def _diag():
            process(True)
        # ks > l tiles are fully masked: no compute at all (causal early-exit).
        last_ks = l
    else:
        process(False)
        last_ks = ns - 1

    @pl.when(ks == last_ks)
    def _finalize():
        # Deferred normalization: one f32 reciprocal on (NH, TL, hd) context.
        ctx = acc_scr[...] * pl.reciprocal(d_scr[...], approx=approx_recip)
        ctx = ctx.astype(cd)
        # Fused output projection: accumulate per-head (TL, hd) @ (hd, H).
        # (Finalize-only loop; live set stays a single (TL, H) f32 slab.)
        out = bo_ref[...]                             # (1, H) f32, broadcasts
        for h in range(num_heads):
            out = out + jnp.dot(ctx[h], wo_ref[h],
                                preferred_element_type=jnp.float32)
        o_ref[0] = out.astype(o_ref.dtype)


def _tpu_vmem_capacity_bytes():
    try:
        return int(pltpu.get_tpu_info().vmem_capacity_bytes)
    except Exception:
        return 128 * 1024 * 1024


def _pick_tile(dim, vmem_bytes):
    # Biggest tile that fits; smaller candidates on 64 MiB-VMEM chips (v7x).
    cands = (512, 256, 128) if vmem_bytes >= 96 * 1024 * 1024 else (256, 128)
    for c in cands:
        if dim % c == 0:
            return c
    return dim


def _single_buffered_spec(block_shape, index_map):
    """Single-buffer grid-invariant operands (graceful fallback on old JAX)."""
    if hasattr(pl, "Buffered"):
        try:
            return pl.BlockSpec(block_shape, index_map,
                                pipeline_mode=pl.Buffered(1))
        except TypeError:
            pass
    return pl.BlockSpec(block_shape, index_map)


def attention_block(x, kv, key_mask, params, *, num_heads, masking=True,
                    compute_dtype=jnp.float32, out_dtype=None,
                    block_l=None, block_s=None):
    """Eval-mode forward of AttentionBlock.

    x: (B, L, H) queries; kv: (B, S, H) keys==values;
    key_mask: (B, S) bool (True => padded key) or None.
    params = (wq, wk, wv, wo, bq, bk, bv, bo) in PyTorch layout (y = x @ W.T + b).
    """
    B, L, H = x.shape
    S = kv.shape[1]
    assert H % num_heads == 0
    hd = H // num_heads
    if masking:
        assert L == S, "the module's (l, l) causal mask requires L == S"
    if out_dtype is None:
        out_dtype = compute_dtype

    wq, wk, wv, wo, bq, bk, bv, bo = params
    bq = jnp.reshape(bq, (-1,)).astype(jnp.float32)
    bk = jnp.reshape(bk, (-1,)).astype(jnp.float32)
    bv = jnp.reshape(bv, (-1,)).astype(jnp.float32)
    bo = jnp.reshape(bo, (-1,)).astype(jnp.float32)
    scale = 1.0 / math.sqrt(hd)

    f32 = jnp.float32
    x32 = x.astype(f32)
    kv32 = kv.astype(f32)

    # Q/K/V projections as single full-width GEMMs in XLA (review opt 1b);
    # softmax scale folded into Q; head-major layout, cast once to MXU dtype.
    def head_major(t, n):
        return (t.reshape(B, n, num_heads, hd)
                 .transpose(0, 2, 1, 3)
                 .astype(compute_dtype))

    q3 = head_major((x32 @ wq.T.astype(f32) + bq) * scale, L)   # (B, NH, L, hd)
    k3 = head_major(kv32 @ wk.T.astype(f32) + bk, S)            # (B, NH, S, hd)
    v3 = head_major(kv32 @ wv.T.astype(f32) + bv, S)            # (B, NH, S, hd)

    wo3 = wo.T.reshape(num_heads, hd, H).astype(compute_dtype)  # per-head W_o^T
    bo2 = bo.reshape(1, H)

    has_key_mask = key_mask is not None
    if has_key_mask:
        kpm = jnp.where(key_mask, NEG_INF, 0.0).astype(f32).reshape(B, 1, S)

    # Generation-aware tiling / VMEM budget (review opt 6).
    vmem_cap = _tpu_vmem_capacity_bytes()
    if block_l is None:
        block_l = _pick_tile(L, vmem_cap)
    if masking:
        block_s = block_l          # diagonal-tile bookkeeping assumes TS == TL
    elif block_s is None:
        block_s = _pick_tile(S, vmem_cap)
    assert L % block_l == 0 and S % block_s == 0
    nl, ns = L // block_l, S // block_s

    approx_recip = jnp.dtype(compute_dtype) != jnp.dtype(jnp.float32)

    kernel = partial(_flash_mha_kernel, num_heads=num_heads, masking=masking,
                     has_key_mask=has_key_mask, tl=block_l, ts=block_s,
                     approx_recip=approx_recip, compute_dtype=compute_dtype)

    if masking:
        # Clamp the key-tile index on skipped (fully-masked) steps so the
        # pipeline re-uses the resident block and issues no DMA for them.
        kv_idx = lambda b, l, ks: (b, 0, jnp.minimum(ks, l), 0)
        kpm_idx = lambda b, l, ks: (b, 0, jnp.minimum(ks, l))
    else:
        kv_idx = lambda b, l, ks: (b, 0, ks, 0)
        kpm_idx = lambda b, l, ks: (b, 0, ks)

    in_specs = [
        pl.BlockSpec((1, num_heads, block_l, hd), lambda b, l, ks: (b, 0, l, 0)),
        pl.BlockSpec((1, num_heads, block_s, hd), kv_idx),
        pl.BlockSpec((1, num_heads, block_s, hd), kv_idx),
    ]
    args = [q3, k3, v3]
    if has_key_mask:
        in_specs.append(pl.BlockSpec((1, 1, block_s), kpm_idx))
        args.append(kpm)
    in_specs += [
        _single_buffered_spec((num_heads, hd, H), lambda b, l, ks: (0, 0, 0)),
        _single_buffered_spec((1, H), lambda b, l, ks: (0, 0)),
    ]
    args += [wo3, bo2]

    grid_spec = pltpu.PrefetchScalarGridSpec(
        num_scalar_prefetch=0,
        grid=(B, nl, ns),
        in_specs=in_specs,
        out_specs=pl.BlockSpec((1, block_l, H), lambda b, l, ks: (b, l, 0)),
        scratch_shapes=[
            pltpu.VMEM((num_heads, block_l, 1), jnp.float32),    # running max
            pltpu.VMEM((num_heads, block_l, 1), jnp.float32),    # running denom
            pltpu.VMEM((num_heads, block_l, hd), jnp.float32),   # context acc
        ],
    )

    cd_bytes = jnp.dtype(compute_dtype).itemsize
    pairs = (L * S) // (2 if masking else 1)          # causal halves the work
    cost = pl.CostEstimate(
        flops=int(B * (4 * num_heads * pairs * hd + 2 * L * H * H)),
        transcendentals=int(B * num_heads * pairs),
        bytes_accessed=int(
            cd_bytes * (B * num_heads * L * hd            # q
                        + 2 * nl * B * num_heads * S * hd  # k, v re-streamed per L tile
                        + H * H)                           # wo
            + jnp.dtype(out_dtype).itemsize * B * L * H),
    )

    return pl.pallas_call(
        kernel,
        out_shape=jax.ShapeDtypeStruct((B, L, H), out_dtype),
        grid_spec=grid_spec,
        compiler_params=pltpu.CompilerParams(
            dimension_semantics=("parallel", "parallel", "arbitrary"),
            vmem_limit_bytes=min(100 * 1024 * 1024, int(0.75 * vmem_cap)),
        ),
        cost_estimate=cost,
    )(*args)


def mha_reference(x, kv, key_mask, params, *, num_heads, masking=True):
    """Pure-JAX f32 reference with the module's exact math."""
    wq, wk, wv, wo, bq, bk, bv, bo = params
    bq = jnp.reshape(bq, (-1,)); bk = jnp.reshape(bk, (-1,))
    bv = jnp.reshape(bv, (-1,)); bo = jnp.reshape(bo, (-1,))
    B, L, H = x.shape
    S = kv.shape[1]
    hd = H // num_heads
    scale = 1.0 / math.sqrt(hd)

    q = x @ wq.T + bq
    k = kv @ wk.T + bk
    v = kv @ wv.T + bv
    q = q.reshape(B, L, num_heads, hd).transpose(0, 2, 1, 3)
    k = k.reshape(B, S, num_heads, hd).transpose(0, 2, 1, 3)
    v = v.reshape(B, S, num_heads, hd).transpose(0, 2, 1, 3)

    s = jnp.einsum("bhld,bhsd->bhls", q, k) * scale
    if masking:
        row = jax.lax.broadcasted_iota(jnp.int32, (L, S), 0)
        col = jax.lax.broadcasted_iota(jnp.int32, (L, S), 1)
        s = s + jnp.where(col > row, NEG_INF, 0.0)[None, None]
    if key_mask is not None:
        s = s + jnp.where(key_mask, NEG_INF, 0.0)[:, None, None, :]

    s = s - jnp.max(s, axis=-1, keepdims=True)
    p = jnp.exp(s)
    p = p / jnp.sum(p, axis=-1, keepdims=True)

    ctx = jnp.einsum("bhls,bhsd->bhld", p, v).transpose(0, 2, 1, 3).reshape(B, L, H)
    return ctx @ wo.T + bo


if __name__ == "__main__":
    # Small shapes consistent with the module (hidden divisible by num_heads;
    # L == S because the module builds an (l, l) causal mask).
    B, L, S, H, NH = 2, 8, 8, 32, 4

    key = jax.random.PRNGKey(0)
    k_x, k_kv, k_w, k_b, k_wo = jax.random.split(key, 5)

    x = jax.random.normal(k_x, (B, L, H), dtype=jnp.float32)
    kv = jax.random.normal(k_kv, (B, S, H), dtype=jnp.float32)
    # key padding mask: last two key positions of batch element 1 are padding
    key_mask = jnp.zeros((B, S), dtype=bool).at[1, S - 2:].set(True)

    # Deterministic parameter init (mirrors in_proj_weight (3H, H) + out_proj).
    in_proj_w = jax.random.normal(k_w, (3 * H, H), jnp.float32) * (1.0 / math.sqrt(H))
    in_proj_b = jax.random.normal(k_b, (3 * H,), jnp.float32) * 0.01
    wq, wk, wv = in_proj_w[:H], in_proj_w[H:2 * H], in_proj_w[2 * H:]
    bq, bk, bv = in_proj_b[:H], in_proj_b[H:2 * H], in_proj_b[2 * H:]
    wo = jax.random.normal(k_wo, (H, H), jnp.float32) * (1.0 / math.sqrt(H))
    bo = jnp.zeros((H,), jnp.float32)
    params = (wq, wk, wv, wo, bq, bk, bv, bo)

    ref = mha_reference(x, kv, key_mask, params, num_heads=NH, masking=True)

    # 1) exact path: f32 MXU operands, exact reciprocal, causal + key padding.
    out_f32 = jax.block_until_ready(
        attention_block(x, kv, key_mask, params, num_heads=NH, masking=True,
                        compute_dtype=jnp.float32))
    assert out_f32.shape == (B, L, H) and out_f32.dtype == jnp.float32
    assert jnp.allclose(out_f32, ref, atol=1e-4, rtol=1e-4), "f32 mismatch vs reference"

    # 2) perf path: bf16 MXU operands, f32 softmax/accumulation, bf16 output.
    out_bf16 = jax.block_until_ready(
        attention_block(x, kv, key_mask, params, num_heads=NH, masking=True,
                        compute_dtype=jnp.bfloat16))
    assert out_bf16.dtype == jnp.bfloat16
    out_bf16_f32 = out_bf16.astype(jnp.float32)
    assert bool(jnp.all(jnp.isfinite(out_bf16_f32)))
    assert jnp.allclose(out_bf16_f32, ref, atol=1e-1, rtol=1e-1), "bf16 mismatch vs reference"

    # 3) no key-padding mask: the kpm input/DMA is statically dropped.
    ref_nm = mha_reference(x, kv, None, params, num_heads=NH, masking=True)
    out_nm = jax.block_until_ready(
        attention_block(x, kv, None, params, num_heads=NH, masking=True,
                        compute_dtype=jnp.float32))
    assert jnp.allclose(out_nm, ref_nm, atol=1e-4, rtol=1e-4), "no-mask mismatch vs reference"

    # 4) masking=False with L != S (cross-attention style key/value input).
    S2 = 16
    kv2 = jax.random.normal(jax.random.PRNGKey(3), (B, S2, H), jnp.float32)
    km2 = jnp.zeros((B, S2), dtype=bool).at[0, S2 - 3:].set(True)
    ref_x = mha_reference(x, kv2, km2, params, num_heads=NH, masking=False)
    out_x = jax.block_until_ready(
        attention_block(x, kv2, km2, params, num_heads=NH, masking=False,
                        compute_dtype=jnp.float32))
    assert jnp.allclose(out_x, ref_x, atol=1e-4, rtol=1e-4), "cross-attn mismatch vs reference"

    print("KERNEL_OK")
</pallas_src>

<mosaic_0001>
module attributes {stable_mosaic.version = 11 : i64} {
  func.func @_flash_mha_kernel(%arg0: i32, %arg1: i32, %arg2: i32, %arg3: memref<1x4x8x8xf32, #tpu.memory_space<vmem>>, %arg4: memref<1x4x8x8xf32, #tpu.memory_space<vmem>>, %arg5: memref<1x4x8x8xf32, #tpu.memory_space<vmem>>, %arg6: memref<1x1x8xf32, #tpu.memory_space<vmem>>, %arg7: memref<4x8x32xf32, #tpu.memory_space<vmem>>, %arg8: memref<1x32xf32, #tpu.memory_space<vmem>>, %arg9: memref<1x8x32xf32, #tpu.memory_space<vmem>>, %arg10: memref<4x8x1xf32, #tpu.memory_space<vmem>>, %arg11: memref<4x8x1xf32, #tpu.memory_space<vmem>>, %arg12: memref<4x8x8xf32, #tpu.memory_space<vmem>>) attributes {dimension_semantics = [#tpu.dimension_semantics<parallel>, #tpu.dimension_semantics<parallel>, #tpu.dimension_semantics<arbitrary>], iteration_bounds = array<i64: 2, 1, 1>, scalar_prefetch = 0 : i64, scratch_operands = 3 : i64, tpu.core_type = #tpu.core_type<tc>, window_params = [{transform_indices = @transform_0, window_bounds = array<i64: 1, 4, 8, 8>}, {transform_indices = @transform_1, window_bounds = array<i64: 1, 4, 8, 8>}, {transform_indices = @transform_2, window_bounds = array<i64: 1, 4, 8, 8>}, {transform_indices = @transform_3, window_bounds = array<i64: 1, 1, 8>}, {pipeline_mode = #tpu.pipeline_mode<synchronous>, transform_indices = @transform_4, window_bounds = array<i64: 4, 8, 32>}, {pipeline_mode = #tpu.pipeline_mode<synchronous>, transform_indices = @transform_5, window_bounds = array<i64: 1, 32>}, {transform_indices = @transform_6, window_bounds = array<i64: 1, 8, 32>}]} {
    %c0_i32 = arith.constant 0 : i32
    %0 = arith.cmpi eq, %arg2, %c0_i32 : i32
    %1 = arith.extui %0 : i1 to i32
    %c0_i32_0 = arith.constant 0 : i32
    %2 = arith.cmpi ne, %1, %c0_i32_0 : i32
    scf.if %2 {
      %cst = arith.constant 0xFF800000 : f32
      %12 = vector.broadcast %cst : f32 to vector<4x8x1xf32>
      %c0 = arith.constant 0 : index
      %c0_4 = arith.constant 0 : index
      %c0_5 = arith.constant 0 : index
      %13 = vector.load %arg10[%c0, %c0_4, %c0_5] : memref<4x8x1xf32, #tpu.memory_space<vmem>>, vector<4x8x1xf32>
      tpu.vector_store %arg10[%c0, %c0_4, %c0_5], %12 {strides = array<i32>} : memref<4x8x1xf32, #tpu.memory_space<vmem>>, vector<4x8x1xf32>,
      %cst_6 = arith.constant 0.000000e+00 : f32
      %14 = vector.broadcast %cst_6 : f32 to vector<4x8x1xf32>
      %c0_7 = arith.constant 0 : index
      %c0_8 = arith.constant 0 : index
      %c0_9 = arith.constant 0 : index
      %15 = vector.load %arg11[%c0_7, %c0_8, %c0_9] : memref<4x8x1xf32, #tpu.memory_space<vmem>>, vector<4x8x1xf32>
      tpu.vector_store %arg11[%c0_7, %c0_8, %c0_9], %14 {strides = array<i32>} : memref<4x8x1xf32, #tpu.memory_space<vmem>>, vector<4x8x1xf32>,
      %cst_10 = arith.constant 0.000000e+00 : f32
      %16 = vector.broadcast %cst_10 : f32 to vector<4x8x8xf32>
      %c0_11 = arith.constant 0 : index
      %c0_12 = arith.constant 0 : index
      %c0_13 = arith.constant 0 : index
      %17 = vector.load %arg12[%c0_11, %c0_12, %c0_13] : memref<4x8x8xf32, #tpu.memory_space<vmem>>, vector<4x8x8xf32>
      tpu.vector_store %arg12[%c0_11, %c0_12, %c0_13], %16 {strides = array<i32>} : memref<4x8x8xf32, #tpu.memory_space<vmem>>, vector<4x8x8xf32>,
    } else {
    }
    %3 = arith.cmpi slt, %arg2, %arg1 : i32
    %4 = arith.extui %3 : i1 to i32
    %c0_i32_1 = arith.constant 0 : i32
    %5 = arith.cmpi ne, %4, %c0_i32_1 : i32
    scf.if %5 {
      %c0 = arith.constant 0 : index
      %c0_4 = arith.constant 0 : index
      %c0_5 = arith.constant 0 : index
      %c0_6 = arith.constant 0 : index
      %12 = vector.load %arg3[%c0, %c0_4, %c0_5, %c0_6] : memref<1x4x8x8xf32, #tpu.memory_space<vmem>>, vector<1x4x8x8xf32>
      %13 = vector.shape_cast %12 : vector<1x4x8x8xf32> to vector<4x8x8xf32>
      %c0_7 = arith.constant 0 : index
      %c0_8 = arith.constant 0 : index
      %c0_9 = arith.constant 0 : index
      %c0_10 = arith.constant 0 : index
      %14 = vector.load %arg4[%c0_7, %c0_8, %c0_9, %c0_10] : memref<1x4x8x8xf32, #tpu.memory_space<vmem>>, vector<1x4x8x8xf32>
      %15 = vector.shape_cast %14 : vector<1x4x8x8xf32> to vector<4x8x8xf32>
      "tpu.trace_start"() <{level = 10 : i32, message = "htd,hsd->hts"}> : () -> ()
      %cst = arith.constant dense<0.000000e+00> : vector<4x8x8xf32>
      %16 = tpu.matmul %13, %15, %cst {dimension_numbers = #tpu.dot_dimension_numbers<[2], [2], [1], [1], [0, 0, 0, 1, 1, 1], [0], [0]>} : vector<4x8x8xf32>, vector<4x8x8xf32>, vector<4x8x8xf32> -> vector<4x8x8xf32>
      "tpu.trace_stop"() : () -> ()
      %c0_11 = arith.constant 0 : index
      %c0_12 = arith.constant 0 : index
      %c0_13 = arith.constant 0 : index
      %17 = vector.load %arg6[%c0_11, %c0_12, %c0_13] : memref<1x1x8xf32, #tpu.memory_space<vmem>>, vector<1x1x8xf32>
      %18 = vector.shape_cast %17 : vector<1x1x8xf32> to vector<1x8xf32>
      %19 = vector.shape_cast %18 : vector<1x8xf32> to vector<1x1x8xf32>
      %20 = vector.broadcast %19 : vector<1x1x8xf32> to vector<4x8x8xf32>
      %21 = arith.addf %16, %20 : vector<4x8x8xf32>
      %c0_14 = arith.constant 0 : index
      %c0_15 = arith.constant 0 : index
      %c0_16 = arith.constant 0 : index
      %22 = vector.load %arg10[%c0_14, %c0_15, %c0_16] : memref<4x8x1xf32, #tpu.memory_space<vmem>>, vector<4x8x1xf32>
      %cst_17 = arith.constant dense<0xFF800000> : vector<4x8xf32>
      %23 = vector.multi_reduction <maximumf>, %21, %cst_17 [2] : vector<4x8x8xf32> to vector<4x8xf32>
      %24 = vector.shape_cast %23 : vector<4x8xf32> to vector<4x8x1xf32>
      %25 = arith.maximumf %22, %24 : vector<4x8x1xf32>
      %26 = arith.subf %22, %25 : vector<4x8x1xf32>
      %27 = math.exp %26 : vector<4x8x1xf32>
      %28 = vector.broadcast %25 : vector<4x8x1xf32> to vector<4x8x8xf32>
      %29 = arith.subf %21, %28 : vector<4x8x8xf32>
      %30 = math.exp %29 : vector<4x8x8xf32>
      %c0_18 = arith.constant 0 : index
      %c0_19 = arith.constant 0 : index
      %c0_20 = arith.constant 0 : index
      %31 = vector.load %arg11[%c0_18, %c0_19, %c0_20] : memref<4x8x1xf32, #tpu.memory_space<vmem>>, vector<4x8x1xf32>
      %32 = arith.mulf %27, %31 : vector<4x8x1xf32>
      %cst_21 = arith.constant dense<0.000000e+00> : vector<4x8xf32>
      %33 = vector.multi_reduction <add>, %30, %cst_21 [2] : vector<4x8x8xf32> to vector<4x8xf32>
      %34 = vector.shape_cast %33 : vector<4x8xf32> to vector<4x8x1xf32>
      %35 = arith.addf %32, %34 : vector<4x8x1xf32>
      %c0_22 = arith.constant 0 : index
      %c0_23 = arith.constant 0 : index
      %c0_24 = arith.constant 0 : index
      %36 = vector.load %arg11[%c0_22, %c0_23, %c0_24] : memref<4x8x1xf32, #tpu.memory_space<vmem>>, vector<4x8x1xf32>
      tpu.vector_store %arg11[%c0_22, %c0_23, %c0_24], %35 {strides = array<i32>} : memref<4x8x1xf32, #tpu.memory_space<vmem>>, vector<4x8x1xf32>,
      %c0_25 = arith.constant 0 : index
      %c0_26 = arith.constant 0 : index
      %c0_27 = arith.constant 0 : index
      %37 = vector.load %arg12[%c0_25, %c0_26, %c0_27] : memref<4x8x8xf32, #tpu.memory_space<vmem>>, vector<4x8x8xf32>
      %38 = vector.broadcast %27 : vector<4x8x1xf32> to vector<4x8x8xf32>
      %39 = arith.mulf %38, %37 : vector<4x8x8xf32>
      %c0_28 = arith.constant 0 : index
      %c0_29 = arith.constant 0 : index
      %c0_30 = arith.constant 0 : index
      %c0_31 = arith.constant 0 : index
      %40 = vector.load %arg5[%c0_28, %c0_29, %c0_30, %c0_31] : memref<1x4x8x8xf32, #tpu.memory_space<vmem>>, vector<1x4x8x8xf32>
      %41 = vector.shape_cast %40 : vector<1x4x8x8xf32> to vector<4x8x8xf32>
      "tpu.trace_start"() <{level = 10 : i32, message = "hts,hsd->htd"}> : () -> ()
      %cst_32 = arith.constant dense<0.000000e+00> : vector<4x8x8xf32>
      %42 = tpu.matmul %30, %41, %cst_32 {dimension_numbers = #tpu.dot_dimension_numbers<[2], [1], [1], [2], [0, 0, 0, 1, 1, 2], [0], [0]>} : vector<4x8x8xf32>, vector<4x8x8xf32>, vector<4x8x8xf32> -> vector<4x8x8xf32>
      "tpu.trace_stop"() : () -> ()
      %43 = arith.addf %39, %42 : vector<4x8x8xf32>
      %c0_33 = arith.constant 0 : index
      %c0_34 = arith.constant 0 : index
      %c0_35 = arith.constant 0 : index
      %44 = vector.load %arg12[%c0_33, %c0_34, %c0_35] : memref<4x8x8xf32, #tpu.memory_space<vmem>>, vector<4x8x8xf32>
      tpu.vector_store %arg12[%c0_33, %c0_34, %c0_35], %43 {strides = array<i32>} : memref<4x8x8xf32, #tpu.memory_space<vmem>>, vector<4x8x8xf32>,
      %c0_36 = arith.constant 0 : index
      %c0_37 = arith.constant 0 : index
      %c0_38 = arith.constant 0 : index
      %45 = vector.load %arg10[%c0_36, %c0_37, %c0_38] : memref<4x8x1xf32, #tpu.memory_space<vmem>>, vector<4x8x1xf32>
      tpu.vector_store %arg10[%c0_36, %c0_37, %c0_38], %25 {strides = array<i32>} : memref<4x8x1xf32, #tpu.memory_space<vmem>>, vector<4x8x1xf32>,
    } else {
    }
    %6 = arith.cmpi eq, %arg2, %arg1 : i32
    %7 = arith.extui %6 : i1 to i32
    %c0_i32_2 = arith.constant 0 : i32
    %8 = arith.cmpi ne, %7, %c0_i32_2 : i32
    scf.if %8 {
      %c0 = arith.constant 0 : index
      %c0_4 = arith.constant 0 : index
      %c0_5 = arith.constant 0 : index
      %c0_6 = arith.constant 0 : index
      %12 = vector.load %arg3[%c0, %c0_4, %c0_5, %c0_6] : memref<1x4x8x8xf32, #tpu.memory_space<vmem>>, vector<1x4x8x8xf32>
      %13 = vector.shape_cast %12 : vector<1x4x8x8xf32> to vector<4x8x8xf32>
      %c0_7 = arith.constant 0 : index
      %c0_8 = arith.constant 0 : index
      %c0_9 = arith.constant 0 : index
      %c0_10 = arith.constant 0 : index
      %14 = vector.load %arg4[%c0_7, %c0_8, %c0_9, %c0_10] : memref<1x4x8x8xf32, #tpu.memory_space<vmem>>, vector<1x4x8x8xf32>
      %15 = vector.shape_cast %14 : vector<1x4x8x8xf32> to vector<4x8x8xf32>
      "tpu.trace_start"() <{level = 10 : i32, message = "htd,hsd->hts"}> : () -> ()
      %cst = arith.constant dense<0.000000e+00> : vector<4x8x8xf32>
      %16 = tpu.matmul %13, %15, %cst {dimension_numbers = #tpu.dot_dimension_numbers<[2], [2], [1], [1], [0, 0, 0, 1, 1, 1], [0], [0]>} : vector<4x8x8xf32>, vector<4x8x8xf32>, vector<4x8x8xf32> -> vector<4x8x8xf32>
      "tpu.trace_stop"() : () -> ()
      %c0_11 = arith.constant 0 : index
      %c0_12 = arith.constant 0 : index
      %c0_13 = arith.constant 0 : index
      %17 = vector.load %arg6[%c0_11, %c0_12, %c0_13] : memref<1x1x8xf32, #tpu.memory_space<vmem>>, vector<1x1x8xf32>
      %18 = vector.shape_cast %17 : vector<1x1x8xf32> to vector<1x8xf32>
      %19 = vector.shape_cast %18 : vector<1x8xf32> to vector<1x1x8xf32>
      %20 = vector.broadcast %19 : vector<1x1x8xf32> to vector<4x8x8xf32>
      %21 = arith.addf %16, %20 : vector<4x8x8xf32>
      %22 = tpu.iota {dimensions = array<i32: 0>} : vector<8x8xi32>
      %23 = tpu.iota {dimensions = array<i32: 1>} : vector<8x8xi32>
      %24 = arith.cmpi sgt, %23, %22 : vector<8x8xi32>
      %cst_14 = arith.constant -1.000000e+30 : f32
      %cst_15 = arith.constant 0.000000e+00 : f32
      %25 = vector.broadcast %cst_14 : f32 to vector<8x8xf32>
      %26 = vector.broadcast %cst_15 : f32 to vector<8x8xf32>
      %27 = arith.select %24, %25, %26 : vector<8x8xi1>, vector<8x8xf32>
      %28 = vector.shape_cast %27 : vector<8x8xf32> to vector<1x8x8xf32>
      %29 = vector.broadcast %28 : vector<1x8x8xf32> to vector<4x8x8xf32>
      %30 = arith.addf %21, %29 : vector<4x8x8xf32>
      %c0_16 = arith.constant 0 : index
      %c0_17 = arith.constant 0 : index
      %c0_18 = arith.constant 0 : index
      %31 = vector.load %arg10[%c0_16, %c0_17, %c0_18] : memref<4x8x1xf32, #tpu.memory_space<vmem>>, vector<4x8x1xf32>
      %cst_19 = arith.constant dense<0xFF800000> : vector<4x8xf32>
      %32 = vector.multi_reduction <maximumf>, %30, %cst_19 [2] : vector<4x8x8xf32> to vector<4x8xf32>
      %33 = vector.shape_cast %32 : vector<4x8xf32> to vector<4x8x1xf32>
      %34 = arith.maximumf %31, %33 : vector<4x8x1xf32>
      %35 = arith.subf %31, %34 : vector<4x8x1xf32>
      %36 = math.exp %35 : vector<4x8x1xf32>
      %37 = vector.broadcast %34 : vector<4x8x1xf32> to vector<4x8x8xf32>
      %38 = arith.subf %30, %37 : vector<4x8x8xf32>
      %39 = math.exp %38 : vector<4x8x8xf32>
      %c0_20 = arith.constant 0 : index
      %c0_21 = arith.constant 0 : index
      %c0_22 = arith.constant 0 : index
      %40 = vector.load %arg11[%c0_20, %c0_21, %c0_22] : memref<4x8x1xf32, #tpu.memory_space<vmem>>, vector<4x8x1xf32>
      %41 = arith.mulf %36, %40 : vector<4x8x1xf32>
      %cst_23 = arith.constant dense<0.000000e+00> : vector<4x8xf32>
      %42 = vector.multi_reduction <add>, %39, %cst_23 [2] : vector<4x8x8xf32> to vector<4x8xf32>
      %43 = vector.shape_cast %42 : vector<4x8xf32> to vector<4x8x1xf32>
      %44 = arith.addf %41, %43 : vector<4x8x1xf32>
      %c0_24 = arith.constant 0 : index
      %c0_25 = arith.constant 0 : index
      %c0_26 = arith.constant 0 : index
      %45 = vector.load %arg11[%c0_24, %c0_25, %c0_26] : memref<4x8x1xf32, #tpu.memory_space<vmem>>, vector<4x8x1xf32>
      tpu.vector_store %arg11[%c0_24, %c0_25, %c0_26], %44 {strides = array<i32>} : memref<4x8x1xf32, #tpu.memory_space<vmem>>, vector<4x8x1xf32>,
      %c0_27 = arith.constant 0 : index
      %c0_28 = arith.constant 0 : index
      %c0_29 = arith.constant 0 : index
      %46 = vector.load %arg12[%c0_27, %c0_28, %c0_29] : memref<4x8x8xf32, #tpu.memory_space<vmem>>, vector<4x8x8xf32>
      %47 = vector.broadcast %36 : vector<4x8x1xf32> to vector<4x8x8xf32>
      %48 = arith.mulf %47, %46 : vector<4x8x8xf32>
      %c0_30 = arith.constant 0 : index
      %c0_31 = arith.constant 0 : index
      %c0_32 = arith.constant 0 : index
      %c0_33 = arith.constant 0 : index
      %49 = vector.load %arg5[%c0_30, %c0_31, %c0_32, %c0_33] : memref<1x4x8x8xf32, #tpu.memory_space<vmem>>, vector<1x4x8x8xf32>
      %50 = vector.shape_cast %49 : vector<1x4x8x8xf32> to vector<4x8x8xf32>
      "tpu.trace_start"() <{level = 10 : i32, message = "hts,hsd->htd"}> : () -> ()
      %cst_34 = arith.constant dense<0.000000e+00> : vector<4x8x8xf32>
      %51 = tpu.matmul %39, %50, %cst_34 {dimension_numbers = #tpu.dot_dimension_numbers<[2], [1], [1], [2], [0, 0, 0, 1, 1, 2], [0], [0]>} : vector<4x8x8xf32>, vector<4x8x8xf32>, vector<4x8x8xf32> -> vector<4x8x8xf32>
      "tpu.trace_stop"() : () -> ()
      %52 = arith.addf %48, %51 : vector<4x8x8xf32>
      %c0_35 = arith.constant 0 : index
      %c0_36 = arith.constant 0 : index
      %c0_37 = arith.constant 0 : index
      %53 = vector.load %arg12[%c0_35, %c0_36, %c0_37] : memref<4x8x8xf32, #tpu.memory_space<vmem>>, vector<4x8x8xf32>
      tpu.vector_store %arg12[%c0_35, %c0_36, %c0_37], %52 {strides = array<i32>} : memref<4x8x8xf32, #tpu.memory_space<vmem>>, vector<4x8x8xf32>,
      %c0_38 = arith.constant 0 : index
      %c0_39 = arith.constant 0 : index
      %c0_40 = arith.constant 0 : index
      %54 = vector.load %arg10[%c0_38, %c0_39, %c0_40] : memref<4x8x1xf32, #tpu.memory_space<vmem>>, vector<4x8x1xf32>
      tpu.vector_store %arg10[%c0_38, %c0_39, %c0_40], %34 {strides = array<i32>} : memref<4x8x1xf32, #tpu.memory_space<vmem>>, vector<4x8x1xf32>,
    } else {
    }
    %9 = arith.cmpi eq, %arg2, %arg1 : i32
    %10 = arith.extui %9 : i1 to i32
    %c0_i32_3 = arith.constant 0 : i32
    %11 = arith.cmpi ne, %10, %c0_i32_3 : i32
    scf.if %11 {
      %c0 = arith.constant 0 : index
      %c0_4 = arith.constant 0 : index
      %c0_5 = arith.constant 0 : index
      %12 = vector.load %arg12[%c0, %c0_4, %c0_5] : memref<4x8x8xf32, #tpu.memory_space<vmem>>, vector<4x8x8xf32>
      %c0_6 = arith.constant 0 : index
      %c0_7 = arith.constant 0 : index
      %c0_8 = arith.constant 0 : index
      %13 = vector.load %arg11[%c0_6, %c0_7, %c0_8] : memref<4x8x1xf32, #tpu.memory_space<vmem>>, vector<4x8x1xf32>
      %14 = tpu.reciprocal %13 : vector<4x8x1xf32> -> vector<4x8x1xf32>
      %15 = vector.broadcast %14 : vector<4x8x1xf32> to vector<4x8x8xf32>
      %16 = arith.mulf %12, %15 : vector<4x8x8xf32>
      %c0_9 = arith.constant 0 : index
      %c0_10 = arith.constant 0 : index
      %17 = vector.load %arg8[%c0_9, %c0_10] : memref<1x32xf32, #tpu.memory_space<vmem>>, vector<1x32xf32>
      %18 = vector.extract_strided_slice %16 {offsets = [0, 0, 0], sizes = [1, 8, 8], strides = [1, 1, 1]} : vector<4x8x8xf32> to vector<1x8x8xf32>
      %19 = vector.shape_cast %18 : vector<1x8x8xf32> to vector<8x8xf32>
      %c0_11 = arith.constant 0 : index
      %c0_12 = arith.constant 0 : index
      %c0_13 = arith.constant 0 : index
      %20 = vector.load %arg7[%c0_11, %c0_12, %c0_13] : memref<4x8x32xf32, #tpu.memory_space<vmem>>, vector<1x8x32xf32>
      %21 = vector.shape_cast %20 : vector<1x8x32xf32> to vector<8x32xf32>
      %cst = arith.constant dense<0.000000e+00> : vector<8x32xf32>
      %22 = tpu.matmul %19, %21, %cst {dimension_numbers = #tpu.dot_dimension_numbers<[1], [0], [0], [1], [0, 0, 1, 1], [], []>} : vector<8x8xf32>, vector<8x32xf32>, vector<8x32xf32> -> vector<8x32xf32>
      %23 = vector.broadcast %17 : vector<1x32xf32> to vector<8x32xf32>
      %24 = arith.addf %23, %22 : vector<8x32xf32>
      %25 = vector.extract_strided_slice %16 {offsets = [1, 0, 0], sizes = [1, 8, 8], strides = [1, 1, 1]} : vector<4x8x8xf32> to vector<1x8x8xf32>
      %26 = vector.shape_cast %25 : vector<1x8x8xf32> to vector<8x8xf32>
      %c1 = arith.constant 1 : index
      %c0_14 = arith.constant 0 : index
      %c0_15 = arith.constant 0 : index
      %27 = vector.load %arg7[%c1, %c0_14, %c0_15] : memref<4x8x32xf32, #tpu.memory_space<vmem>>, vector<1x8x32xf32>
      %28 = vector.shape_cast %27 : vector<1x8x32xf32> to vector<8x32xf32>
      %cst_16 = arith.constant dense<0.000000e+00> : vector<8x32xf32>
      %29 = tpu.matmul %26, %28, %cst_16 {dimension_numbers = #tpu.dot_dimension_numbers<[1], [0], [0], [1], [0, 0, 1, 1], [], []>} : vector<8x8xf32>, vector<8x32xf32>, vector<8x32xf32> -> vector<8x32xf32>
      %30 = arith.addf %24, %29 : vector<8x32xf32>
      %31 = vector.extract_strided_slice %16 {offsets = [2, 0, 0], sizes = [1, 8, 8], strides = [1, 1, 1]} : vector<4x8x8xf32> to vector<1x8x8xf32>
      %32 = vector.shape_cast %31 : vector<1x8x8xf32> to vector<8x8xf32>
      %c2 = arith.constant 2 : index
      %c0_17 = arith.constant 0 : index
      %c0_18 = arith.constant 0 : index
      %33 = vector.load %arg7[%c2, %c0_17, %c0_18] : memref<4x8x32xf32, #tpu.memory_space<vmem>>, vector<1x8x32xf32>
      %34 = vector.shape_cast %33 : vector<1x8x32xf32> to vector<8x32xf32>
      %cst_19 = arith.constant dense<0.000000e+00> : vector<8x32xf32>
      %35 = tpu.matmul %32, %34, %cst_19 {dimension_numbers = #tpu.dot_dimension_numbers<[1], [0], [0], [1], [0, 0, 1, 1], [], []>} : vector<8x8xf32>, vector<8x32xf32>, vector<8x32xf32> -> vector<8x32xf32>
      %36 = arith.addf %30, %35 : vector<8x32xf32>
      %37 = vector.extract_strided_slice %16 {offsets = [3, 0, 0], sizes = [1, 8, 8], strides = [1, 1, 1]} : vector<4x8x8xf32> to vector<1x8x8xf32>
      %38 = vector.shape_cast %37 : vector<1x8x8xf32> to vector<8x8xf32>
      %c3 = arith.constant 3 : index
      %c0_20 = arith.constant 0 : index
      %c0_21 = arith.constant 0 : index
      %39 = vector.load %arg7[%c3, %c0_20, %c0_21] : memref<4x8x32xf32, #tpu.memory_space<vmem>>, vector<1x8x32xf32>
      %40 = vector.shape_cast %39 : vector<1x8x32xf32> to vector<8x32xf32>
      %cst_22 = arith.constant dense<0.000000e+00> : vector<8x32xf32>
      %41 = tpu.matmul %38, %40, %cst_22 {dimension_numbers = #tpu.dot_dimension_numbers<[1], [0], [0], [1], [0, 0, 1, 1], [], []>} : vector<8x8xf32>, vector<8x32xf32>, vector<8x32xf32> -> vector<8x32xf32>
      %42 = arith.addf %36, %41 : vector<8x32xf32>
      %c0_23 = arith.constant 0 : index
      %c0_24 = arith.constant 0 : index
      %c0_25 = arith.constant 0 : index
      %43 = vector.load %arg9[%c0_23, %c0_24, %c0_25] : memref<1x8x32xf32, #tpu.memory_space<vmem>>, vector<1x8x32xf32>
      %44 = vector.shape_cast %43 : vector<1x8x32xf32> to vector<8x32xf32>
      %45 = vector.shape_cast %42 : vector<8x32xf32> to vector<1x8x32xf32>
      tpu.vector_store %arg9[%c0_23, %c0_24, %c0_25], %45 {strides = array<i32>} : memref<1x8x32xf32, #tpu.memory_space<vmem>>, vector<1x8x32xf32>,
    } else {
    }
    return
  }
  func.func @transform_0(%arg0: i32, %arg1: i32, %arg2: i32) -> (i32, i32, i32, i32) {
    %c0_i32 = arith.constant 0 : i32
    %c0_i32_0 = arith.constant 0 : i32
    %c0_i32_1 = arith.constant 0 : i32
    return %arg0, %c0_i32, %arg1, %c0_i32_0 : i32, i32, i32, i32
  }
  func.func @transform_1(%arg0: i32, %arg1: i32, %arg2: i32) -> (i32, i32, i32, i32) {
    %0 = arith.minsi %arg2, %arg1 : i32
    %c0_i32 = arith.constant 0 : i32
    %c0_i32_0 = arith.constant 0 : i32
    %c0_i32_1 = arith.constant 0 : i32
    return %arg0, %c0_i32, %0, %c0_i32_0 : i32, i32, i32, i32
  }
  func.func @transform_2(%arg0: i32, %arg1: i32, %arg2: i32) -> (i32, i32, i32, i32) {
    %0 = arith.minsi %arg2, %arg1 : i32
    %c0_i32 = arith.constant 0 : i32
    %c0_i32_0 = arith.constant 0 : i32
    %c0_i32_1 = arith.constant 0 : i32
    return %arg0, %c0_i32, %0, %c0_i32_0 : i32, i32, i32, i32
  }
  func.func @transform_3(%arg0: i32, %arg1: i32, %arg2: i32) -> (i32, i32, i32) {
    %0 = arith.minsi %arg2, %arg1 : i32
    %c0_i32 = arith.constant 0 : i32
    %c0_i32_0 = arith.constant 0 : i32
    return %arg0, %c0_i32, %0 : i32, i32, i32
  }
  func.func @transform_4(%arg0: i32, %arg1: i32, %arg2: i32) -> (i32, i32, i32) {
    %c0_i32 = arith.constant 0 : i32
    %c0_i32_0 = arith.constant 0 : i32
    %c0_i32_1 = arith.constant 0 : i32
    %c0_i32_2 = arith.constant 0 : i32
    return %c0_i32, %c0_i32_0, %c0_i32_1 : i32, i32, i32
  }
  func.func @transform_5(%arg0: i32, %arg1: i32, %arg2: i32) -> (i32, i32) {
    %c0_i32 = arith.constant 0 : i32
    %c0_i32_0 = arith.constant 0 : i32
    %c0_i32_1 = arith.constant 0 : i32
    return %c0_i32, %c0_i32_0 : i32, i32
  }
  func.func @transform_6(%arg0: i32, %arg1: i32, %arg2: i32) -> (i32, i32, i32) {
    %c0_i32 = arith.constant 0 : i32
    %c0_i32_0 = arith.constant 0 : i32
    return %arg0, %arg1, %c0_i32 : i32, i32, i32
  }
}

</mosaic_0001>

<llo_original>
// kernel: tpu_custom_call.1
$region0: #{tpu_custom_call.1}
  #allocation0 [shape = 'u32[]', space=smem, size = 0x4, offset = 0x4, fixed_abs, tag = 'smem constant byte address 0x4 - core index']
  #allocation1 [shape = 'u32[144,128]{1,0:T(1,128)}', space=vmem, size = 0x12000, scoped, tag = 'internal scratch']
  #allocation2 [shape = 'f32[4,8,1]{2,1,0:T(8,128)}', space=vmem, size = 0x4000, scoped, tag = 'scratch operand']
  #allocation3 [shape = 'f32[4,8,1]{2,1,0:T(8,128)}', space=vmem, size = 0x4000, scoped, tag = 'scratch operand']
  #allocation4 [shape = 'f32[4,8,8]{2,1,0:T(8,128)}', space=vmem, size = 0x4000, scoped, tag = 'scratch operand']
  %s0 = inlined_call_operand.hbm [shape: f32[2,4,8,8], index: 0, kind: input, shape index: {}]
  %s1 = inlined_call_operand.hbm [shape: f32[2,4,8,8], index: 1, kind: input, shape index: {}]
  %s2 = inlined_call_operand.hbm [shape: f32[2,4,8,8], index: 2, kind: input, shape index: {}]
  %s3 = inlined_call_operand.hbm [shape: f32[2,1,8], index: 3, kind: input, shape index: {}]
  %s4 = inlined_call_operand.hbm [shape: f32[4,8,32], index: 4, kind: input, shape index: {}]
  %s5 = inlined_call_operand.hbm [shape: f32[1,32], index: 5, kind: input, shape index: {}]
  %s6 = inlined_call_operand.hbm [shape: f32[2,8,32], index: 6, kind: output, shape index: {}]
  %s7 = sld [smem:[#allocation0]]
  $region93: #{tpu_custom_call.1} parent=0
    _
  %s9 = ssub.s32 1, %s7
  %s10 = scalar_select 0, %s9, %s7
  $region1: #{tpu_custom_call.1} parent=0
    #allocation5 [shape = 'u8[32768]{0}', space=vmem, size = 0x8000, scoped, tag = 'input window, operand 0']
    #allocation6 [shape = 's32[2]{0}', space=sflag, size = 0x8, scoped, tag = 'scoped memory for tpu_custom_call.1']
    #allocation7 [shape = 's32[2]{0}', space=sflag, size = 0x8, scoped, tag = 'scoped memory for tpu_custom_call.1']
    #allocation8 [shape = 'u8[32768]{0}', space=vmem, size = 0x8000, scoped, tag = 'input window, operand 1']
    #allocation9 [shape = 's32[2]{0}', space=sflag, size = 0x8, scoped, tag = 'scoped memory for tpu_custom_call.1']
    #allocation10 [shape = 'u8[32768]{0}', space=vmem, size = 0x8000, scoped, tag = 'input window, operand 2']
    #allocation11 [shape = 'u8[1024]{0}', space=vmem, size = 0x400, scoped, tag = 'input window, operand 3']
    #allocation12 [shape = 's32[2]{0}', space=sflag, size = 0x8, scoped, tag = 'scoped memory for tpu_custom_call.1']
    #allocation13 [shape = 'u8[16384]{0}', space=vmem, size = 0x4000, scoped, tag = 'input window, operand 4, single buffered']
    #allocation14 [shape = 'u8[512]{0}', space=vmem, size = 0x400, scoped, tag = 'input window, operand 5, single buffered']
    #allocation15 [shape = 's32[1]{0}', space=sflag, size = 0x4, scoped, tag = 'scoped memory for tpu_custom_call.1']
    #allocation16 [shape = 'u8[8192]{0}', space=vmem, size = 0x2000, scoped, tag = 'output window, operand 0']
    %11 = vsyncpa [#allocation6], 0
    %s12 = scalar_lea.sflag [#allocation6], 1
    %13 = vsyncpa %s12, 0
    %14 = vsyncpa [#allocation9], 0
    %s15 = scalar_lea.sflag [#allocation9], 1
    %16 = vsyncpa %s15, 0
    %17 = vsyncpa [#allocation12], 0
    %s18 = scalar_lea.sflag [#allocation12], 1
    %19 = vsyncpa %s18, 0
    %20 = vsyncpa [#allocation15], 0
    %21 = vsyncpa [#allocation7], 0
    %s22 = scalar_lea.sflag [#allocation7], 1
    %23 = vsyncpa %s22, 0
    loop: start=0, step=1, limit=4
    $region2: #{tpu_custom_call.1} parent=1 // loop_pre_header
      _
    $region3: #{tpu_custom_call.1} parent=1 // loop_header
      %s25 = sphi 0, %s29
      %p26 = scmp.ge.s32.totalorder %s25, 4
      %s32 = sphi 0, %s51
      %s33 = sphi 0, %s47
      %s34 = sphi 0, %s43
      %s35 = sphi 0, %s32
      %s36 = sphi 0, %s33
      %s37 = sphi 0, %s34
      %s38 = sphi 0, %s35
      %s39 = sphi 0, %s36
      %s40 = sphi 0, %s37
      %s56 = sphi 0, %s58
      %s59 = sphi 0, %s56
      %s60 = sphi 0, %s59
      %s76 = sphi 0, %s60
      %s88 = sphi 0, %s90
      %s91 = sphi 0, %s88
      %s92 = sphi 0, %s91
      %s108 = sphi 0, %s92
      %s120 = sphi 0, %s122
      %s123 = sphi 0, %s120
      %s124 = sphi 0, %s123
      %s140 = sphi 0, %s124
      %s152 = sphi 0, %s154
      %s155 = sphi 0, %s152
      %s156 = sphi 0, %s155
      %s172 = sphi 0, %s156
      %s176 = sphi 0, %s176
      %s178 = sphi 0, %s176
      %s179 = sphi 0, %s178
      %s193 = sphi 0, %s179
      %s197 = sphi 0, %s197
      %s199 = sphi 0, %s197
      %s200 = sphi 0, %s199
      %s214 = sphi 0, %s200
      %s222 = sphi 0, %s224
      %s225 = sphi 0, %s222
      %s226 = sphi 0, %s225
      %s242 = sphi 0, %s226
    $region4: #{tpu_custom_call.1} parent=1 // loop_header_branch
      %28 = sbr.rel (%p26) target = $region8
    $region5: #{tpu_custom_call.1} parent=1 // loop_body
      %s30 = ssub.s32 %s25, 1
      %s31 = ssub.s32 %s25, 2
      %s41 = sadd.s32 1, %s34
      %p42 = scmp.ge.s32.totalorder %s41, 1
      %s43 = scalar_select %p42, 0, %s41
      %s44 = sadd.s32 1, %s33
      %s45 = scalar_select %p42, %s44, %s33
      %p46 = scmp.ge.s32.totalorder %s45, 1
      %s47 = scalar_select %p46, 0, %s45
      %s48 = sadd.s32 1, %s32
      %s49 = scalar_select %p46, %s48, %s32
      %p50 = scmp.ge.s32.totalorder %s49, 2
      %s51 = scalar_select %p50, 0, %s49
      %s52 = ssub.s32 %s32, %s51
      %s53 = ssub.s32 %s33, %s47
      %s54 = sor.u32 %s52, %s53
      %p55 = scmp.eq.s32.totalorder %s54, 0
      %s57 = sadd.s32 %s56, 1
      %s58 = scalar_select %p55, %s56, %s57
      %p61 = pneg %p55
      %p62 = scmp.eq.s32.totalorder %s25, 1
      %p63 = por %p61, %p62
      %p64 = scmp.ne.s32.totalorder %s56, %s59
      %p65 = scmp.eq.s32.totalorder %s25, 0
      %p66 = por %p64, %p65
      %p67 = scmp.ne.s32.totalorder %s56, %s59
      %p68 = scmp.eq.s32.totalorder %s30, 1
      %p69 = por %p67, %p68
      %p70 = scmp.ne.s32.totalorder %s59, %s60
      %p71 = scmp.eq.s32.totalorder %s30, 0
      %p72 = por %p70, %p71
      %p73 = scmp.ne.s32.totalorder %s59, %s60
      %p74 = scmp.eq.s32.totalorder %s31, 1
      %p75 = por %p73, %p74
      %p77 = scmp.ne.s32.totalorder %s60, %s76
      %p78 = scmp.eq.s32.totalorder %s31, 0
      %p79 = por %p77, %p78
      %p80 = scmp.lt.s32.totalorder %s34, %s33
      %s81 = scalar_select %p80, %s34, %s33
      %p82 = scmp.lt.s32.totalorder %s43, %s47
      %s83 = scalar_select %p82, %s43, %s47
      %s84 = ssub.s32 %s32, %s51
      %s85 = ssub.s32 %s81, %s83
      %s86 = sor.u32 %s84, %s85
      %p87 = scmp.eq.s32.totalorder %s86, 0
      %s89 = sadd.s32 %s88, 1
      %s90 = scalar_select %p87, %s88, %s89
      %p93 = pneg %p87
      %p94 = scmp.eq.s32.totalorder %s25, 1
      %p95 = por %p93, %p94
      %p96 = scmp.ne.s32.totalorder %s88, %s91
      %p97 = scmp.eq.s32.totalorder %s25, 0
      %p98 = por %p96, %p97
      %p99 = scmp.ne.s32.totalorder %s88, %s91
      %p100 = scmp.eq.s32.totalorder %s30, 1
      %p101 = por %p99, %p100
      %p102 = scmp.ne.s32.totalorder %s91, %s92
      %p103 = scmp.eq.s32.totalorder %s30, 0
      %p104 = por %p102, %p103
      %p105 = scmp.ne.s32.totalorder %s91, %s92
      %p106 = scmp.eq.s32.totalorder %s31, 1
      %p107 = por %p105, %p106
      %p109 = scmp.ne.s32.totalorder %s92, %s108
      %p110 = scmp.eq.s32.totalorder %s31, 0
      %p111 = por %p109, %p110
      %p112 = scmp.lt.s32.totalorder %s34, %s33
      %s113 = scalar_select %p112, %s34, %s33
      %p114 = scmp.lt.s32.totalorder %s43, %s47
      %s115 = scalar_select %p114, %s43, %s47
      %s116 = ssub.s32 %s32, %s51
      %s117 = ssub.s32 %s113, %s115
      %s118 = sor.u32 %s116, %s117
      %p119 = scmp.eq.s32.totalorder %s118, 0
      %s121 = sadd.s32 %s120, 1
      %s122 = scalar_select %p119, %s120, %s121
      %p125 = pneg %p119
      %p126 = scmp.eq.s32.totalorder %s25, 1
      %p127 = por %p125, %p126
      %p128 = scmp.ne.s32.totalorder %s120, %s123
      %p129 = scmp.eq.s32.totalorder %s25, 0
      %p130 = por %p128, %p129
      %p131 = scmp.ne.s32.totalorder %s120, %s123
      %p132 = scmp.eq.s32.totalorder %s30, 1
      %p133 = por %p131, %p132
      %p134 = scmp.ne.s32.totalorder %s123, %s124
      %p135 = scmp.eq.s32.totalorder %s30, 0
      %p136 = por %p134, %p135
      %p137 = scmp.ne.s32.totalorder %s123, %s124
      %p138 = scmp.eq.s32.totalorder %s31, 1
      %p139 = por %p137, %p138
      %p141 = scmp.ne.s32.totalorder %s124, %s140
      %p142 = scmp.eq.s32.totalorder %s31, 0
      %p143 = por %p141, %p142
      %p144 = scmp.lt.s32.totalorder %s34, %s33
      %s145 = scalar_select %p144, %s34, %s33
      %p146 = scmp.lt.s32.totalorder %s43, %s47
      %s147 = scalar_select %p146, %s43, %s47
      %s148 = ssub.s32 %s32, %s51
      %s149 = ssub.s32 %s145, %s147
      %s150 = sor.u32 %s148, %s149
      %p151 = scmp.eq.s32.totalorder %s150, 0
      %s153 = sadd.s32 %s152, 1
      %s154 = scalar_select %p151, %s152, %s153
      %p157 = pneg %p151
      %p158 = scmp.eq.s32.totalorder %s25, 1
      %p159 = por %p157, %p158
      %p160 = scmp.ne.s32.totalorder %s152, %s155
      %p161 = scmp.eq.s32.totalorder %s25, 0
      %p162 = por %p160, %p161
      %p163 = scmp.ne.s32.totalorder %s152, %s155
      %p164 = scmp.eq.s32.totalorder %s30, 1
      %p165 = por %p163, %p164
      %p166 = scmp.ne.s32.totalorder %s155, %s156
      %p167 = scmp.eq.s32.totalorder %s30, 0
      %p168 = por %p166, %p167
      %p169 = scmp.ne.s32.totalorder %s155, %s156
      %p170 = scmp.eq.s32.totalorder %s31, 1
      %p171 = por %p169, %p170
      %p173 = scmp.ne.s32.totalorder %s156, %s172
      %p174 = scmp.eq.s32.totalorder %s31, 0
      %p175 = por %p173, %p174
      %s177 = sadd.s32 %s176, 1
      %p180 = scmp.eq.s32.totalorder %s25, 1
      %p181 = scmp.ne.s32.totalorder %s176, %s178
      %p182 = scmp.eq.s32.totalorder %s25, 0
      %p183 = por %p181, %p182
      %p184 = scmp.ne.s32.totalorder %s176, %s178
      %p185 = scmp.eq.s32.totalorder %s30, 1
      %p186 = por %p184, %p185
      %p187 = scmp.ne.s32.totalorder %s178, %s179
      %p188 = scmp.eq.s32.totalorder %s30, 0
      %p189 = por %p187, %p188
      %p190 = scmp.ne.s32.totalorder %s178, %s179
      %p191 = scmp.eq.s32.totalorder %s31, 1
      %p192 = por %p190, %p191
      %p194 = scmp.ne.s32.totalorder %s179, %s193
      %p195 = scmp.eq.s32.totalorder %s31, 0
      %p196 = por %p194, %p195
      %s198 = sadd.s32 %s197, 1
      %p201 = scmp.eq.s32.totalorder %s25, 1
      %p202 = scmp.ne.s32.totalorder %s197, %s199
      %p203 = scmp.eq.s32.totalorder %s25, 0
      %p204 = por %p202, %p203
      %p205 = scmp.ne.s32.totalorder %s197, %s199
      %p206 = scmp.eq.s32.totalorder %s30, 1
      %p207 = por %p205, %p206
      %p208 = scmp.ne.s32.totalorder %s199, %s200
      %p209 = scmp.eq.s32.totalorder %s30, 0
      %p210 = por %p208, %p209
      %p211 = scmp.ne.s32.totalorder %s199, %s200
      %p212 = scmp.eq.s32.totalorder %s31, 1
      %p213 = por %p211, %p212
      %p215 = scmp.ne.s32.totalorder %s200, %s214
      %p216 = scmp.eq.s32.totalorder %s31, 0
      %p217 = por %p215, %p216
      %s218 = ssub.s32 %s32, %s51
      %s219 = ssub.s32 %s33, %s47
      %s220 = sor.u32 %s218, %s219
      %p221 = scmp.eq.s32.totalorder %s220, 0
      %s223 = sadd.s32 %s222, 1
      %s224 = scalar_select %p221, %s222, %s223
      %p227 = pneg %p221
      %p228 = scmp.eq.s32.totalorder %s25, 1
      %p229 = por %p227, %p228
      %p230 = scmp.ne.s32.totalorder %s222, %s225
      %p231 = scmp.eq.s32.totalorder %s25, 0
      %p232 = por %p230, %p231
      %p233 = scmp.ne.s32.totalorder %s222, %s225
      %p234 = scmp.eq.s32.totalorder %s30, 1
      %p235 = por %p233, %p234
      %p236 = scmp.ne.s32.totalorder %s225, %s226
      %p237 = scmp.eq.s32.totalorder %s30, 0
      %p238 = por %p236, %p237
      %p239 = scmp.ne.s32.totalorder %s225, %s226
      %p240 = scmp.eq.s32.totalorder %s31, 1
      %p241 = por %p239, %p240
      %p243 = scmp.ne.s32.totalorder %s226, %s242
      %p244 = scmp.eq.s32.totalorder %s31, 0
      %p245 = por %p243, %p244
      %p246 = scmp.le.s32.totalorder 1, %s25
      %p247 = scmp.lt.s32.totalorder %s25, 3
      %p248 = pnand %p246, %p247
      %p249 = pneg %p248
      // Predicated region
      $region9: #{tpu_custom_call.1} parent=5 // pred_check
        _
      $region10: #{tpu_custom_call.1} parent=5 // pred_check_branch
        %251 = sbr.rel (%p248) target = $region12
      $region11: #{tpu_custom_call.1} parent=5 // pred_region
        %s252 = ssub.s32 %s25, 1
        // Predicated region
        $region13: #{tpu_custom_call.1} parent=11 // pred_check
          %p253 = pneg %p189
        $region14: #{tpu_custom_call.1} parent=11 // pred_check_branch
          %255 = sbr.rel (%p253) target = $region16
        $region15: #{tpu_custom_call.1} parent=11 // pred_region
          %s257 = ssub.s32 512, 512
          %258 = vsyncadd [#allocation12], %s257
          %s259 = sshll.u32 [#allocation13], 4
          %s260 = int_to_ptr.vmem [resolvable:$true] %s259
          %265 = dma.hbm_to_vmem [thread:$0]  %s4, 512, %s260, [#allocation12], 128, 128, 8
        $region16: #{tpu_custom_call.1} parent=11 // pred_fallthru
          _
        // Predicated region
        $region17: #{tpu_custom_call.1} parent=11 // pred_check
          %p266 = pneg %p210
        $region18: #{tpu_custom_call.1} parent=11 // pred_check_branch
          %268 = sbr.rel (%p266) target = $region20
        $region19: #{tpu_custom_call.1} parent=11 // pred_region
          %s270 = ssub.s32 16, 16
          %271 = vsyncadd [#allocation15], %s270
          %s273 = sshll.u32 [#allocation14], 4
          %s274 = int_to_ptr.vmem [resolvable:$true] %s273
          %276 = dma.hbm_to_vmem [thread:$0]  %s5, 16, %s274, [#allocation15]
        $region20: #{tpu_custom_call.1} parent=11 // pred_fallthru
          _
      $region12: #{tpu_custom_call.1} parent=5 // pred_fallthru
        _
      %p277 = scmp.lt.s32.totalorder %s25, 2
      // Predicated region
      $region21: #{tpu_custom_call.1} parent=5 // pred_check
        %p278 = pneg %p277
      $region22: #{tpu_custom_call.1} parent=5 // pred_check_branch
        %280 = sbr.rel (%p278) target = $region24
      $region23: #{tpu_custom_call.1} parent=5 // pred_region
        // Predicated region
        $region25: #{tpu_custom_call.1} parent=23 // pred_check
          %p281 = pneg %p66
        $region26: #{tpu_custom_call.1} parent=23 // pred_check_branch
          %283 = sbr.rel (%p281) target = $region28
        $region27: #{tpu_custom_call.1} parent=23 // pred_region
          %s284 = sand.u32 %s56, 1
          %s285 = scalar_lea.sflag [#allocation6], %s284
          %s286 = sand.u32 %s56, 1
          %s287 = smul.addr %s286, 32
          %s288 = scalar_lea.vmem [#allocation5], %s287
          %s290 = ssub.s32 512, 512
          %291 = vsyncadd %s285, %s290
          %s292 = smul.addr %s32, 4
          %s293 = sadd.s32 %s33, %s292
          %s294 = smul.addr %s293, 128
          %s295 = scalar_lea.hbm %s0, %s294
          %s296 = sshll.u32 %s288, 4
          %s297 = int_to_ptr.vmem [resolvable:$true] %s296
          %302 = dma.hbm_to_vmem [thread:$0]  %s295, 512, %s297, %s285, 128, 128, 8
        $region28: #{tpu_custom_call.1} parent=23 // pred_fallthru
          _
        // Predicated region
        $region29: #{tpu_custom_call.1} parent=23 // pred_check
          %p303 = pneg %p98
        $region30: #{tpu_custom_call.1} parent=23 // pred_check_branch
          %305 = sbr.rel (%p303) target = $region32
        $region31: #{tpu_custom_call.1} parent=23 // pred_region
          %s306 = sand.u32 %s25, 1
          %s307 = scalar_lea.sflag [#allocation9], %s306
          %s308 = sand.u32 %s88, 1
          %s309 = smul.addr %s308, 32
          %s310 = scalar_lea.vmem [#allocation8], %s309
          %p311 = scmp.lt.s32.totalorder %s34, %s33
          %s312 = scalar_select %p311, %s34, %s33
          %s314 = ssub.s32 512, 512
          %315 = vsyncadd %s307, %s314
          %s316 = smul.addr %s32, 4
          %s317 = sadd.s32 %s312, %s316
          %s318 = smul.addr %s317, 128
          %s319 = scalar_lea.hbm %s1, %s318
          %s320 = sshll.u32 %s310, 4
          %s321 = int_to_ptr.vmem [resolvable:$true] %s320
          %326 = dma.hbm_to_vmem [thread:$0]  %s319, 512, %s321, %s307, 128, 128, 8
        $region32: #{tpu_custom_call.1} parent=23 // pred_fallthru
          _
        // Predicated region
        $region33: #{tpu_custom_call.1} parent=23 // pred_check
          %p327 = pneg %p130
        $region34: #{tpu_custom_call.1} parent=23 // pred_check_branch
          %329 = sbr.rel (%p327) target = $region36
        $region35: #{tpu_custom_call.1} parent=23 // pred_region
          %s330 = sand.u32 %s25, 1
          %s331 = scalar_lea.sflag [#allocation9], %s330
          %s332 = sand.u32 %s120, 1
          %s333 = smul.addr %s332, 32
          %s334 = scalar_lea.vmem [#allocation10], %s333
          %p335 = scmp.lt.s32.totalorder %s34, %s33
          %s336 = scalar_select %p335, %s34, %s33
          %s338 = ssub.s32 512, 512
          %339 = vsyncadd %s331, %s338
          %s340 = smul.addr %s32, 4
          %s341 = sadd.s32 %s336, %s340
          %s342 = smul.addr %s341, 128
          %s343 = scalar_lea.hbm %s2, %s342
          %s344 = sshll.u32 %s334, 4
          %s345 = int_to_ptr.vmem [resolvable:$true] %s344
          %350 = dma.hbm_to_vmem [thread:$0]  %s343, 512, %s345, %s331, 128, 128, 8
        $region36: #{tpu_custom_call.1} parent=23 // pred_fallthru
          _
        // Predicated region
        $region37: #{tpu_custom_call.1} parent=23 // pred_check
          %p351 = pneg %p162
        $region38: #{tpu_custom_call.1} parent=23 // pred_check_branch
          %353 = sbr.rel (%p351) target = $region40
        $region39: #{tpu_custom_call.1} parent=23 // pred_region
          %s354 = sand.u32 %s25, 1
          %s355 = scalar_lea.sflag [#allocation12], %s354
          %s356 = sand.u32 %s152, 1
          %s357 = scalar_lea.vmem [#allocation11], %s356
          %p358 = scmp.lt.s32.totalorder %s34, %s33
          %s359 = scalar_select %p358, %s34, %s33
          %s361 = ssub.s32 16, 16
          %362 = vsyncadd %s355, %s361
          %s363 = sadd.s32 %s359, %s32
          %s364 = smul.addr %s363, 16
          %s365 = scalar_lea.hbm %s3, %s364
          %s367 = sshll.u32 %s357, 4
          %s368 = int_to_ptr.vmem [resolvable:$true] %s367
          %370 = dma.hbm_to_vmem [thread:$0]  %s365, 16, %s368, %s355
        $region40: #{tpu_custom_call.1} parent=23 // pred_fallthru
          _
      $region24: #{tpu_custom_call.1} parent=5 // pred_fallthru
        _
      %p371 = scmp.le.s32.totalorder 1, %s25
      %p372 = scmp.lt.s32.totalorder %s25, 3
      %p373 = pnand %p371, %p372
      %p374 = pneg %p373
      // Predicated region
      $region41: #{tpu_custom_call.1} parent=5 // pred_check
        _
      $region42: #{tpu_custom_call.1} parent=5 // pred_check_branch
        %376 = sbr.rel (%p373) target = $region44
      $region43: #{tpu_custom_call.1} parent=5 // pred_region
        %s377 = ssub.s32 %s25, 1
        %s378 = sand.u32 %s59, 1
        %s379 = scalar_lea.sflag [#allocation6], %s378
        %s380 = sand.u32 %s59, 1
        %s381 = smul.addr %s380, 32
        %s382 = scalar_lea.vmem [#allocation5], %s381
        // Predicated region
        $region45: #{tpu_custom_call.1} parent=43 // pred_check
          %p383 = pneg %p72
        $region46: #{tpu_custom_call.1} parent=43 // pred_check_branch
          %385 = sbr.rel (%p383) target = $region48
        $region47: #{tpu_custom_call.1} parent=43 // pred_region
          %386 = dma.done %s379, 512
        $region48: #{tpu_custom_call.1} parent=43 // pred_fallthru
          _
        %s387 = sand.u32 %s30, 1
        %s388 = scalar_lea.sflag [#allocation9], %s387
        %s389 = sand.u32 %s91, 1
        %s390 = smul.addr %s389, 32
        %s391 = scalar_lea.vmem [#allocation8], %s390
        // Predicated region
        $region49: #{tpu_custom_call.1} parent=43 // pred_check
          %p392 = pneg %p104
        $region50: #{tpu_custom_call.1} parent=43 // pred_check_branch
          %394 = sbr.rel (%p392) target = $region52
        $region51: #{tpu_custom_call.1} parent=43 // pred_region
          %395 = dma.done %s388, 512
        $region52: #{tpu_custom_call.1} parent=43 // pred_fallthru
          _
        %s396 = sand.u32 %s30, 1
        %s397 = scalar_lea.sflag [#allocation9], %s396
        %s398 = sand.u32 %s123, 1
        %s399 = smul.addr %s398, 32
        %s400 = scalar_lea.vmem [#allocation10], %s399
        // Predicated region
        $region53: #{tpu_custom_call.1} parent=43 // pred_check
          %p401 = pneg %p136
        $region54: #{tpu_custom_call.1} parent=43 // pred_check_branch
          %403 = sbr.rel (%p401) target = $region56
        $region55: #{tpu_custom_call.1} parent=43 // pred_region
          %404 = dma.done %s397, 512
        $region56: #{tpu_custom_call.1} parent=43 // pred_fallthru
          _
        %s405 = sand.u32 %s30, 1
        %s406 = scalar_lea.sflag [#allocation12], %s405
        %s407 = sand.u32 %s155, 1
        %s408 = scalar_lea.vmem [#allocation11], %s407
        // Predicated region
        $region57: #{tpu_custom_call.1} parent=43 // pred_check
          %p409 = pneg %p168
        $region58: #{tpu_custom_call.1} parent=43 // pred_check_branch
          %411 = sbr.rel (%p409) target = $region60
        $region59: #{tpu_custom_call.1} parent=43 // pred_region
          %412 = dma.done %s406, 16
        $region60: #{tpu_custom_call.1} parent=43 // pred_fallthru
          _
        // Predicated region
        $region61: #{tpu_custom_call.1} parent=43 // pred_check
          %p413 = pneg %p189
        $region62: #{tpu_custom_call.1} parent=43 // pred_check_branch
          %415 = sbr.rel (%p413) target = $region64
        $region63: #{tpu_custom_call.1} parent=43 // pred_region
          %416 = dma.done [#allocation12], 512
        $region64: #{tpu_custom_call.1} parent=43 // pred_fallthru
          _
        // Predicated region
        $region65: #{tpu_custom_call.1} parent=43 // pred_check
          %p417 = pneg %p210
        $region66: #{tpu_custom_call.1} parent=43 // pred_check_branch
          %419 = sbr.rel (%p417) target = $region68
        $region67: #{tpu_custom_call.1} parent=43 // pred_region
          %420 = dma.done [#allocation15], 16
        $region68: #{tpu_custom_call.1} parent=43 // pred_fallthru
          _
        %s421 = sand.u32 %s59, 1
        %s422 = scalar_lea.sflag [#allocation6], %s421
        %s423 = sand.u32 %s59, 1
        %s424 = smul.addr %s423, 32
        %s425 = scalar_lea.vmem [#allocation5], %s424
        %p426 = pneg %p72
        %p427 = pneg %p69
        %s428 = sand.u32 %s30, 1
        %s429 = scalar_lea.sflag [#allocation9], %s428
        %s430 = sand.u32 %s91, 1
        %s431 = smul.addr %s430, 32
        %s432 = scalar_lea.vmem [#allocation8], %s431
        %p433 = pneg %p104
        %p434 = pneg %p101
        %s435 = sand.u32 %s30, 1
        %s436 = scalar_lea.sflag [#allocation9], %s435
        %s437 = sand.u32 %s123, 1
        %s438 = smul.addr %s437, 32
        %s439 = scalar_lea.vmem [#allocation10], %s438
        %p440 = pneg %p136
        %p441 = pneg %p133
        %s442 = sand.u32 %s30, 1
        %s443 = scalar_lea.sflag [#allocation12], %s442
        %s444 = sand.u32 %s155, 1
        %s445 = scalar_lea.vmem [#allocation11], %s444
        %p446 = pneg %p168
        %p447 = pneg %p165
        %p448 = pneg %p189
        %p449 = pneg %p186
        %p450 = pneg %p210
        %p451 = pneg %p207
        %p452 = pneg %p238
        %p453 = pneg %p235
        %s454 = sand.u32 %s225, 1
        %s455 = scalar_lea.sflag [#allocation7], %s454
        %s456 = sand.u32 %s225, 1
        %s457 = smul.addr %s456, 8
        %s458 = scalar_lea.vmem [#allocation16], %s457
        %p459 = scmp.lt.s32.totalorder %s37, %s36
        %s460 = scalar_select %p459, %s37, %s36
        %p461 = scmp.lt.s32.totalorder %s37, %s36
        %s462 = scalar_select %p461, %s37, %s36
        %p463 = scmp.lt.s32.totalorder %s37, %s36
        %s464 = scalar_select %p463, %s37, %s36
        %p465 = scmp.eq.s32.totalorder %s37, 0
        // Predicated region
        $region69: #{tpu_custom_call.1} parent=43 // pred_check
          %p466 = pneg %p465
        $region70: #{tpu_custom_call.1} parent=43 // pred_check_branch
          %468 = sbr.rel (%p466) target = $region72
        $region71: #{tpu_custom_call.1} parent=43 // pred_region
          %vm469 = vcmask 7168
          %470 = vst.msk [vmem:[#allocation2] sm:$0xff] %vm469, -inf
          %471 = vst.msk [vmem:[#allocation2 + $0x8] sm:$0xff] %vm469, -inf
          %472 = vst.msk [vmem:[#allocation2 + $0x10] sm:$0xff] %vm469, -inf
          %473 = vst.msk [vmem:[#allocation2 + $0x18] sm:$0xff] %vm469, -inf
          %474 = vst.msk [vmem:[#allocation3] sm:$0xff] %vm469, 0.0
          %475 = vst.msk [vmem:[#allocation3 + $0x8] sm:$0xff] %vm469, 0.0
          %476 = vst.msk [vmem:[#allocation3 + $0x10] sm:$0xff] %vm469, 0.0
          %477 = vst.msk [vmem:[#allocation3 + $0x18] sm:$0xff] %vm469, 0.0
          %vm478 = vcmask 64512
          %479 = vst.msk [vmem:[#allocation4] sm:$0xff] %vm478, 0.0
          %480 = vst.msk [vmem:[#allocation4 + $0x8] sm:$0xff] %vm478, 0.0
          %481 = vst.msk [vmem:[#allocation4 + $0x10] sm:$0xff] %vm478, 0.0
          %482 = vst.msk [vmem:[#allocation4 + $0x18] sm:$0xff] %vm478, 0.0
        $region72: #{tpu_custom_call.1} parent=43 // pred_fallthru
          _
        %p483 = scmp.lt.s32.totalorder %s37, %s36
        // Predicated region
        $region73: #{tpu_custom_call.1} parent=43 // pred_check
          %p484 = pneg %p483
        $region74: #{tpu_custom_call.1} parent=43 // pred_check_branch
          %486 = sbr.rel (%p484) target = $region76
        $region75: #{tpu_custom_call.1} parent=43 // pred_region
          %v487 = vld [vmem:[%s382] sm:$0xff]
          %v488 = vld [vmem:[%s382 + $0x8] sm:$0xff]
          %v489 = vld [vmem:[%s382 + $0x10] sm:$0xff]
          %v490 = vld [vmem:[%s382 + $0x18] sm:$0xff]
          %v491 = vld [vmem:[%s391] sm:$0xff]
          %v492 = vld [vmem:[%s391 + $0x8] sm:$0xff]
          %v493 = vld [vmem:[%s391 + $0x10] sm:$0xff]
          %v494 = vld [vmem:[%s391 + $0x18] sm:$0xff]
          %v495 = vld [vmem:[%s408] sm:$0x1]
          %v497 = vlaneseq
          %v498 = vshrl.u32 %v497, 7
          %v499 = vsub.s32 0, %v498
          %v500 = vrot.slane %v495, %v499
          %vm502 = vcmask 64512
          %v504 = vsel %vm502, %v487, 0
          %v507 = vsel %vm502, %v491, 0
          %509 = vmatprep.subr.mxu0 0.0
          %510 = vmatpush1.xpose.msra.mxu0 %v507
          %511 = vmatprep.subr.mxu0 0.0
          %512 = vmatpush1.xpose.msra.mxu0 0.0
          %513 = vmatprep.subr.mxu0 0.0
          %514 = vmatpush1.xpose.msra.mxu0 0.0
          %515 = vmatprep.subr.mxu0 0.0
          %516 = vmatpush1.xpose.msra.mxu0 0.0
          %517 = vmatprep.subr.mxu0 0.0
          %518 = vmatpush1.xpose.msra.mxu0 0.0
          %519 = vmatprep.subr.mxu0 0.0
          %520 = vmatpush1.xpose.msra.mxu0 0.0
          %521 = vmatprep.subr.mxu0 0.0
          %522 = vmatpush1.xpose.msra.mxu0 0.0
          %523 = vmatprep.subr.mxu0 0.0
          %524 = vmatpush1.xpose.msra.mxu0 0.0
          %525 = vmatprep.subr.mxu0 0.0
          %526 = vmatpush1.xpose.msra.mxu0 0.0
          %527 = vmatprep.subr.mxu0 0.0
          %528 = vmatpush1.xpose.msra.mxu0 0.0
          %529 = vmatprep.subr.mxu0 0.0
          %530 = vmatpush1.xpose.msra.mxu0 0.0
          %531 = vmatprep.subr.mxu0 0.0
          %532 = vmatpush1.xpose.msra.mxu0 0.0
          %533 = vmatprep.subr.mxu0 0.0
          %534 = vmatpush1.xpose.msra.mxu0 0.0
          %535 = vmatprep.subr.mxu0 0.0
          %536 = vmatpush1.xpose.msra.mxu0 0.0
          %537 = vmatprep.subr.mxu0 0.0
          %538 = vmatpush1.xpose.msra.mxu0 0.0
          %539 = vmatprep.subr.mxu0 0.0
          %540 = vmatpush1.xpose.msra.mxu0 0.0
          %541 = vmatprep.subr.mxu0 0.0
          %542 = vmatpush1.xpose.msra.mxu0 0.0
          %543 = vmatprep.subr.mxu0 0.0
          %544 = vmatpush1.xpose.msra.mxu0 0.0
          %545 = vmatprep.subr.mxu0 0.0
          %546 = vmatpush1.xpose.msra.mxu0 0.0
          %547 = vmatprep.subr.mxu0 0.0
          %548 = vmatpush1.xpose.msra.mxu0 0.0
          %549 = vmatprep.subr.mxu0 0.0
          %550 = vmatpush1.xpose.msra.mxu0 0.0
          %551 = vmatprep.subr.mxu0 0.0
          %552 = vmatpush1.xpose.msra.mxu0 0.0
          %553 = vmatprep.subr.mxu0 0.0
          %554 = vmatpush1.xpose.msra.mxu0 0.0
          %555 = vmatprep.subr.mxu0 0.0
          %556 = vmatpush1.xpose.msra.mxu0 0.0
          %557 = vmatprep.subr.mxu0 0.0
          %558 = vmatpush1.xpose.msra.mxu0 0.0
          %559 = vmatprep.subr.mxu0 0.0
          %560 = vmatpush1.xpose.msra.mxu0 0.0
          %561 = vmatprep.subr.mxu0 0.0
          %562 = vmatpush1.xpose.msra.mxu0 0.0
          %563 = vmatprep.subr.mxu0 0.0
          %564 = vmatpush1.xpose.msra.mxu0 0.0
          %565 = vmatprep.subr.mxu0 0.0
          %566 = vmatpush1.xpose.msra.mxu0 0.0
          %567 = vmatprep.subr.mxu0 0.0
          %568 = vmatpush1.xpose.msra.mxu0 0.0
          %569 = vmatprep.subr.mxu0 0.0
          %570 = vmatpush1.xpose.msra.mxu0 0.0
          %571 = vmatprep.subr.mxu0 0.0
          %572 = vmatpush1.xpose.msra.mxu0 0.0
          %573 = vmatprep.mubr.f32.mxu0 0.0
          %574 = vmatmul.mubr.f32.gmra.mrb[0].mxu0 %v504
          %v575 = vpop.f32.mrb[0].mxu0
          %v576 = vadd.f32 %v500, %v575
          %v577 = vpop.f32.mrb[0].mxu0
          %578 = vdwg.mxu0
          %v580 = vsel %vm502, %v488, 0
          %v583 = vsel %vm502, %v492, 0
          %585 = vmatprep.subr.mxu0 0.0
          %586 = vmatpush1.xpose.msra.mxu0 %v583
          %587 = vmatprep.subr.mxu0 0.0
          %588 = vmatpush1.xpose.msra.mxu0 0.0
          %589 = vmatprep.subr.mxu0 0.0
          %590 = vmatpush1.xpose.msra.mxu0 0.0
          %591 = vmatprep.subr.mxu0 0.0
          %592 = vmatpush1.xpose.msra.mxu0 0.0
          %593 = vmatprep.subr.mxu0 0.0
          %594 = vmatpush1.xpose.msra.mxu0 0.0
          %595 = vmatprep.subr.mxu0 0.0
          %596 = vmatpush1.xpose.msra.mxu0 0.0
          %597 = vmatprep.subr.mxu0 0.0
          %598 = vmatpush1.xpose.msra.mxu0 0.0
          %599 = vmatprep.subr.mxu0 0.0
          %600 = vmatpush1.xpose.msra.mxu0 0.0
          %601 = vmatprep.subr.mxu0 0.0
          %602 = vmatpush1.xpose.msra.mxu0 0.0
          %603 = vmatprep.subr.mxu0 0.0
          %604 = vmatpush1.xpose.msra.mxu0 0.0
          %605 = vmatprep.subr.mxu0 0.0
          %606 = vmatpush1.xpose.msra.mxu0 0.0
          %607 = vmatprep.subr.mxu0 0.0
          %608 = vmatpush1.xpose.msra.mxu0 0.0
          %609 = vmatprep.subr.mxu0 0.0
          %610 = vmatpush1.xpose.msra.mxu0 0.0
          %611 = vmatprep.subr.mxu0 0.0
          %612 = vmatpush1.xpose.msra.mxu0 0.0
          %613 = vmatprep.subr.mxu0 0.0
          %614 = vmatpush1.xpose.msra.mxu0 0.0
          %615 = vmatprep.subr.mxu0 0.0
          %616 = vmatpush1.xpose.msra.mxu0 0.0
          %617 = vmatprep.subr.mxu0 0.0
          %618 = vmatpush1.xpose.msra.mxu0 0.0
          %619 = vmatprep.subr.mxu0 0.0
          %620 = vmatpush1.xpose.msra.mxu0 0.0
          %621 = vmatprep.subr.mxu0 0.0
          %622 = vmatpush1.xpose.msra.mxu0 0.0
          %623 = vmatprep.subr.mxu0 0.0
          %624 = vmatpush1.xpose.msra.mxu0 0.0
          %625 = vmatprep.subr.mxu0 0.0
          %626 = vmatpush1.xpose.msra.mxu0 0.0
          %627 = vmatprep.subr.mxu0 0.0
          %628 = vmatpush1.xpose.msra.mxu0 0.0
          %629 = vmatprep.subr.mxu0 0.0
          %630 = vmatpush1.xpose.msra.mxu0 0.0
          %631 = vmatprep.subr.mxu0 0.0
          %632 = vmatpush1.xpose.msra.mxu0 0.0
          %633 = vmatprep.subr.mxu0 0.0
          %634 = vmatpush1.xpose.msra.mxu0 0.0
          %635 = vmatprep.subr.mxu0 0.0
          %636 = vmatpush1.xpose.msra.mxu0 0.0
          %637 = vmatprep.subr.mxu0 0.0
          %638 = vmatpush1.xpose.msra.mxu0 0.0
          %639 = vmatprep.subr.mxu0 0.0
          %640 = vmatpush1.xpose.msra.mxu0 0.0
          %641 = vmatprep.subr.mxu0 0.0
          %642 = vmatpush1.xpose.msra.mxu0 0.0
          %643 = vmatprep.subr.mxu0 0.0
          %644 = vmatpush1.xpose.msra.mxu0 0.0
          %645 = vmatprep.subr.mxu0 0.0
          %646 = vmatpush1.xpose.msra.mxu0 0.0
          %647 = vmatprep.subr.mxu0 0.0
          %648 = vmatpush1.xpose.msra.mxu0 0.0
          %649 = vmatprep.mubr.f32.mxu0 0.0
          %650 = vmatmul.mubr.f32.gmra.mrb[0].mxu0 %v580
          %v651 = vpop.f32.mrb[0].mxu0
          %v652 = vadd.f32 %v500, %v651
          %v653 = vpop.f32.mrb[0].mxu0
          %654 = vdwg.mxu0
          %v656 = vsel %vm502, %v489, 0
          %v659 = vsel %vm502, %v493, 0
          %661 = vmatprep.subr.mxu0 0.0
          %662 = vmatpush1.xpose.msra.mxu0 %v659
          %663 = vmatprep.subr.mxu0 0.0
          %664 = vmatpush1.xpose.msra.mxu0 0.0
          %665 = vmatprep.subr.mxu0 0.0
          %666 = vmatpush1.xpose.msra.mxu0 0.0
          %667 = vmatprep.subr.mxu0 0.0
          %668 = vmatpush1.xpose.msra.mxu0 0.0
          %669 = vmatprep.subr.mxu0 0.0
          %670 = vmatpush1.xpose.msra.mxu0 0.0
          %671 = vmatprep.subr.mxu0 0.0
          %672 = vmatpush1.xpose.msra.mxu0 0.0
          %673 = vmatprep.subr.mxu0 0.0
          %674 = vmatpush1.xpose.msra.mxu0 0.0
          %675 = vmatprep.subr.mxu0 0.0
          %676 = vmatpush1.xpose.msra.mxu0 0.0
          %677 = vmatprep.subr.mxu0 0.0
          %678 = vmatpush1.xpose.msra.mxu0 0.0
          %679 = vmatprep.subr.mxu0 0.0
          %680 = vmatpush1.xpose.msra.mxu0 0.0
          %681 = vmatprep.subr.mxu0 0.0
          %682 = vmatpush1.xpose.msra.mxu0 0.0
          %683 = vmatprep.subr.mxu0 0.0
          %684 = vmatpush1.xpose.msra.mxu0 0.0
          %685 = vmatprep.subr.mxu0 0.0
          %686 = vmatpush1.xpose.msra.mxu0 0.0
          %687 = vmatprep.subr.mxu0 0.0
          %688 = vmatpush1.xpose.msra.mxu0 0.0
          %689 = vmatprep.subr.mxu0 0.0
          %690 = vmatpush1.xpose.msra.mxu0 0.0
          %691 = vmatprep.subr.mxu0 0.0
          %692 = vmatpush1.xpose.msra.mxu0 0.0
          %693 = vmatprep.subr.mxu0 0.0
          %694 = vmatpush1.xpose.msra.mxu0 0.0
          %695 = vmatprep.subr.mxu0 0.0
          %696 = vmatpush1.xpose.msra.mxu0 0.0
          %697 = vmatprep.subr.mxu0 0.0
          %698 = vmatpush1.xpose.msra.mxu0 0.0
          %699 = vmatprep.subr.mxu0 0.0
          %700 = vmatpush1.xpose.msra.mxu0 0.0
          %701 = vmatprep.subr.mxu0 0.0
          %702 = vmatpush1.xpose.msra.mxu0 0.0
          %703 = vmatprep.subr.mxu0 0.0
          %704 = vmatpush1.xpose.msra.mxu0 0.0
          %705 = vmatprep.subr.mxu0 0.0
          %706 = vmatpush1.xpose.msra.mxu0 0.0
          %707 = vmatprep.subr.mxu0 0.0
          %708 = vmatpush1.xpose.msra.mxu0 0.0
          %709 = vmatprep.subr.mxu0 0.0
          %710 = vmatpush1.xpose.msra.mxu0 0.0
          %711 = vmatprep.subr.mxu0 0.0
          %712 = vmatpush1.xpose.msra.mxu0 0.0
          %713 = vmatprep.subr.mxu0 0.0
          %714 = vmatpush1.xpose.msra.mxu0 0.0
          %715 = vmatprep.subr.mxu0 0.0
          %716 = vmatpush1.xpose.msra.mxu0 0.0
          %717 = vmatprep.subr.mxu0 0.0
          %718 = vmatpush1.xpose.msra.mxu0 0.0
          %719 = vmatprep.subr.mxu0 0.0
          %720 = vmatpush1.xpose.msra.mxu0 0.0
          %721 = vmatprep.subr.mxu0 0.0
          %722 = vmatpush1.xpose.msra.mxu0 0.0
          %723 = vmatprep.subr.mxu0 0.0
          %724 = vmatpush1.xpose.msra.mxu0 0.0
          %725 = vmatprep.mubr.f32.mxu0 0.0
          %726 = vmatmul.mubr.f32.gmra.mrb[0].mxu0 %v656
          %v727 = vpop.f32.mrb[0].mxu0
          %v728 = vadd.f32 %v500, %v727
          %v729 = vpop.f32.mrb[0].mxu0
          %730 = vdwg.mxu0
          %v732 = vsel %vm502, %v490, 0
          %v735 = vsel %vm502, %v494, 0
          %737 = vmatprep.subr.mxu0 0.0
          %738 = vmatpush1.xpose.msra.mxu0 %v735
          %739 = vmatprep.subr.mxu0 0.0
          %740 = vmatpush1.xpose.msra.mxu0 0.0
          %741 = vmatprep.subr.mxu0 0.0
          %742 = vmatpush1.xpose.msra.mxu0 0.0
          %743 = vmatprep.subr.mxu0 0.0
          %744 = vmatpush1.xpose.msra.mxu0 0.0
          %745 = vmatprep.subr.mxu0 0.0
          %746 = vmatpush1.xpose.msra.mxu0 0.0
          %747 = vmatprep.subr.mxu0 0.0
          %748 = vmatpush1.xpose.msra.mxu0 0.0
          %749 = vmatprep.subr.mxu0 0.0
          %750 = vmatpush1.xpose.msra.mxu0 0.0
          %751 = vmatprep.subr.mxu0 0.0
          %752 = vmatpush1.xpose.msra.mxu0 0.0
          %753 = vmatprep.subr.mxu0 0.0
          %754 = vmatpush1.xpose.msra.mxu0 0.0
          %755 = vmatprep.subr.mxu0 0.0
          %756 = vmatpush1.xpose.msra.mxu0 0.0
          %757 = vmatprep.subr.mxu0 0.0
          %758 = vmatpush1.xpose.msra.mxu0 0.0
          %759 = vmatprep.subr.mxu0 0.0
          %760 = vmatpush1.xpose.msra.mxu0 0.0
          %761 = vmatprep.subr.mxu0 0.0
          %762 = vmatpush1.xpose.msra.mxu0 0.0
          %763 = vmatprep.subr.mxu0 0.0
          %764 = vmatpush1.xpose.msra.mxu0 0.0
          %765 = vmatprep.subr.mxu0 0.0
          %766 = vmatpush1.xpose.msra.mxu0 0.0
          %767 = vmatprep.subr.mxu0 0.0
          %768 = vmatpush1.xpose.msra.mxu0 0.0
          %769 = vmatprep.subr.mxu0 0.0
          %770 = vmatpush1.xpose.msra.mxu0 0.0
          %771 = vmatprep.subr.mxu0 0.0
          %772 = vmatpush1.xpose.msra.mxu0 0.0
          %773 = vmatprep.subr.mxu0 0.0
          %774 = vmatpush1.xpose.msra.mxu0 0.0
          %775 = vmatprep.subr.mxu0 0.0
          %776 = vmatpush1.xpose.msra.mxu0 0.0
          %777 = vmatprep.subr.mxu0 0.0
          %778 = vmatpush1.xpose.msra.mxu0 0.0
          %779 = vmatprep.subr.mxu0 0.0
          %780 = vmatpush1.xpose.msra.mxu0 0.0
          %781 = vmatprep.subr.mxu0 0.0
          %782 = vmatpush1.xpose.msra.mxu0 0.0
          %783 = vmatprep.subr.mxu0 0.0
          %784 = vmatpush1.xpose.msra.mxu0 0.0
          %785 = vmatprep.subr.mxu0 0.0
          %786 = vmatpush1.xpose.msra.mxu0 0.0
          %787 = vmatprep.subr.mxu0 0.0
          %788 = vmatpush1.xpose.msra.mxu0 0.0
          %789 = vmatprep.subr.mxu0 0.0
          %790 = vmatpush1.xpose.msra.mxu0 0.0
          %791 = vmatprep.subr.mxu0 0.0
          %792 = vmatpush1.xpose.msra.mxu0 0.0
          %793 = vmatprep.subr.mxu0 0.0
          %794 = vmatpush1.xpose.msra.mxu0 0.0
          %795 = vmatprep.subr.mxu0 0.0
          %796 = vmatpush1.xpose.msra.mxu0 0.0
          %797 = vmatprep.subr.mxu0 0.0
          %798 = vmatpush1.xpose.msra.mxu0 0.0
          %799 = vmatprep.subr.mxu0 0.0
          %800 = vmatpush1.xpose.msra.mxu0 0.0
          %801 = vmatprep.mubr.f32.mxu0 0.0
          %802 = vmatmul.mubr.f32.gmra.mrb[0].mxu0 %v732
          %v803 = vpop.f32.mrb[0].mxu0
          %v804 = vadd.f32 %v500, %v803
          %v805 = vpop.f32.mrb[0].mxu0
          %806 = vdwg.mxu0
          %v807 = vld [vmem:[#allocation2] sm:$0xff]
          %v808 = vld [vmem:[#allocation2 + $0x8] sm:$0xff]
          %v809 = vld [vmem:[#allocation2 + $0x10] sm:$0xff]
          %v810 = vld [vmem:[#allocation2 + $0x18] sm:$0xff]
          %v811 = vsel %vm502, %v576, -inf
          %812 = vmax.xlane.f32.xlu0 %v811
          %v813 = vpop.xlane.xlu0 %812
          %v814 = vsel %vm502, %v652, -inf
          %815 = vmax.xlane.f32.xlu0 %v814
          %v816 = vpop.xlane.xlu0 %815
          %v817 = vsel %vm502, %v728, -inf
          %818 = vmax.xlane.f32.xlu0 %v817
          %v819 = vpop.xlane.xlu0 %818
          %v820 = vsel %vm502, %v804, -inf
          %821 = vmax.xlane.f32.xlu0 %v820
          %v822 = vpop.xlane.xlu0 %821
          %v823 = vmax.f32 %v807, %v813
          %v824 = vmax.f32 %v808, %v816
          %v825 = vmax.f32 %v809, %v819
          %v826 = vmax.f32 %v810, %v822
          %v827 = vsub.f32 %v807, %v823
          %v828 = vsub.f32 %v808, %v824
          %v829 = vsub.f32 %v809, %v825
          %v830 = vsub.f32 %v810, %v826
          %v831 = vmul.f32 %v827, 1.442695
          %v832 = vpow.pop %v831
          %v833 = vmul.f32 %v828, 1.442695
          %v834 = vpow.pop %v833
          %v835 = vmul.f32 %v829, 1.442695
          %v836 = vpow.pop %v835
          %v837 = vmul.f32 %v830, 1.442695
          %v838 = vpow.pop %v837
          %840 = vset.pattern.permute.xlu0 0
          %841 = vperm.xlu0 %840, %v823
          %v842 = vpop.permute.xlu0 %841
          %845 = vset.pattern.permute.xlu0 0
          %846 = vperm.xlu0 %845, %v824
          %v847 = vpop.permute.xlu0 %846
          %850 = vset.pattern.permute.xlu0 0
          %851 = vperm.xlu0 %850, %v825
          %v852 = vpop.permute.xlu0 %851
          %855 = vset.pattern.permute.xlu0 0
          %856 = vperm.xlu0 %855, %v826
          %v857 = vpop.permute.xlu0 %856
          %v859 = vsub.f32 %v576, %v842
          %v860 = vsub.f32 %v652, %v847
          %v861 = vsub.f32 %v728, %v852
          %v862 = vsub.f32 %v804, %v857
          %v863 = vmul.f32 %v859, 1.442695
          %v864 = vpow.pop %v863
          %v865 = vmul.f32 %v860, 1.442695
          %v866 = vpow.pop %v865
          %v867 = vmul.f32 %v861, 1.442695
          %v868 = vpow.pop %v867
          %v869 = vmul.f32 %v862, 1.442695
          %v870 = vpow.pop %v869
          %v871 = vld [vmem:[#allocation3] sm:$0xff]
          %v872 = vld [vmem:[#allocation3 + $0x8] sm:$0xff]
          %v873 = vld [vmem:[#allocation3 + $0x10] sm:$0xff]
          %v874 = vld [vmem:[#allocation3 + $0x18] sm:$0xff]
          %v875 = vmul.f32 %v832, %v871
          %v876 = vmul.f32 %v834, %v872
          %v877 = vmul.f32 %v836, %v873
          %v878 = vmul.f32 %v838, %v874
          %v879 = vsel %vm502, %v864, 0.0
          %880 = vadd.xlane.f32.xlu0 %v879
          %v881 = vpop.xlane.xlu0 %880
          %v882 = vsel %vm502, %v866, 0.0
          %883 = vadd.xlane.f32.xlu0 %v882
          %v884 = vpop.xlane.xlu0 %883
          %v885 = vsel %vm502, %v868, 0.0
          %886 = vadd.xlane.f32.xlu0 %v885
          %v887 = vpop.xlane.xlu0 %886
          %v888 = vsel %vm502, %v870, 0.0
          %889 = vadd.xlane.f32.xlu0 %v888
          %v890 = vpop.xlane.xlu0 %889
          %v891 = vadd.f32 %v875, %v881
          %v892 = vadd.f32 %v876, %v884
          %v893 = vadd.f32 %v877, %v887
          %v894 = vadd.f32 %v878, %v890
          %vm895 = vcmask 7168
          %896 = vst.msk [vmem:[#allocation3] sm:$0xff] %vm895, %v891
          %897 = vst.msk [vmem:[#allocation3 + $0x8] sm:$0xff] %vm895, %v892
          %898 = vst.msk [vmem:[#allocation3 + $0x10] sm:$0xff] %vm895, %v893
          %899 = vst.msk [vmem:[#allocation3 + $0x18] sm:$0xff] %vm895, %v894
          %v900 = vld [vmem:[#allocation4] sm:$0xff]
          %v901 = vld [vmem:[#allocation4 + $0x8] sm:$0xff]
          %v902 = vld [vmem:[#allocation4 + $0x10] sm:$0xff]
          %v903 = vld [vmem:[#allocation4 + $0x18] sm:$0xff]
          %905 = vset.pattern.permute.xlu0 0
          %906 = vperm.xlu0 %905, %v832
          %v907 = vpop.permute.xlu0 %906
          %910 = vset.pattern.permute.xlu0 0
          %911 = vperm.xlu0 %910, %v834
          %v912 = vpop.permute.xlu0 %911
          %915 = vset.pattern.permute.xlu0 0
          %916 = vperm.xlu0 %915, %v836
          %v917 = vpop.permute.xlu0 %916
          %920 = vset.pattern.permute.xlu0 0
          %921 = vperm.xlu0 %920, %v838
          %v922 = vpop.permute.xlu0 %921
          %v924 = vmul.f32 %v907, %v900
          %v925 = vmul.f32 %v912, %v901
          %v926 = vmul.f32 %v917, %v902
          %v927 = vmul.f32 %v922, %v903
          %v928 = vld [vmem:[%s400] sm:$0xff]
          %v929 = vld [vmem:[%s400 + $0x8] sm:$0xff]
          %v930 = vld [vmem:[%s400 + $0x10] sm:$0xff]
          %v931 = vld [vmem:[%s400 + $0x18] sm:$0xff]
          %v933 = vsel %vm502, %v864, 0
          %935 = vmatprep.subr.mxu0 0.0
          %936 = vmatpush1.msra.mxu0 %v928
          %937 = vmatprep.subr.mxu0 0.0
          %938 = vmatpush1.msra.mxu0 0.0
          %939 = vmatprep.subr.mxu0 0.0
          %940 = vmatpush1.msra.mxu0 0.0
          %941 = vmatprep.subr.mxu0 0.0
          %942 = vmatpush1.msra.mxu0 0.0
          %943 = vmatprep.subr.mxu0 0.0
          %944 = vmatpush1.msra.mxu0 0.0
          %945 = vmatprep.subr.mxu0 0.0
          %946 = vmatpush1.msra.mxu0 0.0
          %947 = vmatprep.subr.mxu0 0.0
          %948 = vmatpush1.msra.mxu0 0.0
          %949 = vmatprep.subr.mxu0 0.0
          %950 = vmatpush1.msra.mxu0 0.0
          %951 = vmatprep.subr.mxu0 0.0
          %952 = vmatpush1.msra.mxu0 0.0
          %953 = vmatprep.subr.mxu0 0.0
          %954 = vmatpush1.msra.mxu0 0.0
          %955 = vmatprep.subr.mxu0 0.0
          %956 = vmatpush1.msra.mxu0 0.0
          %957 = vmatprep.subr.mxu0 0.0
          %958 = vmatpush1.msra.mxu0 0.0
          %959 = vmatprep.subr.mxu0 0.0
          %960 = vmatpush1.msra.mxu0 0.0
          %961 = vmatprep.subr.mxu0 0.0
          %962 = vmatpush1.msra.mxu0 0.0
          %963 = vmatprep.subr.mxu0 0.0
          %964 = vmatpush1.msra.mxu0 0.0
          %965 = vmatprep.subr.mxu0 0.0
          %966 = vmatpush1.msra.mxu0 0.0
          %967 = vmatprep.subr.mxu0 0.0
          %968 = vmatpush1.msra.mxu0 0.0
          %969 = vmatprep.subr.mxu0 0.0
          %970 = vmatpush1.msra.mxu0 0.0
          %971 = vmatprep.subr.mxu0 0.0
          %972 = vmatpush1.msra.mxu0 0.0
          %973 = vmatprep.subr.mxu0 0.0
          %974 = vmatpush1.msra.mxu0 0.0
          %975 = vmatprep.subr.mxu0 0.0
          %976 = vmatpush1.msra.mxu0 0.0
          %977 = vmatprep.subr.mxu0 0.0
          %978 = vmatpush1.msra.mxu0 0.0
          %979 = vmatprep.subr.mxu0 0.0
          %980 = vmatpush1.msra.mxu0 0.0
          %981 = vmatprep.subr.mxu0 0.0
          %982 = vmatpush1.msra.mxu0 0.0
          %983 = vmatprep.subr.mxu0 0.0
          %984 = vmatpush1.msra.mxu0 0.0
          %985 = vmatprep.subr.mxu0 0.0
          %986 = vmatpush1.msra.mxu0 0.0
          %987 = vmatprep.subr.mxu0 0.0
          %988 = vmatpush1.msra.mxu0 0.0
          %989 = vmatprep.subr.mxu0 0.0
          %990 = vmatpush1.msra.mxu0 0.0
          %991 = vmatprep.subr.mxu0 0.0
          %992 = vmatpush1.msra.mxu0 0.0
          %993 = vmatprep.subr.mxu0 0.0
          %994 = vmatpush1.msra.mxu0 0.0
          %995 = vmatprep.subr.mxu0 0.0
          %996 = vmatpush1.msra.mxu0 0.0
          %997 = vmatprep.subr.mxu0 0.0
          %998 = vmatpush1.msra.mxu0 0.0
          %999 = vmatprep.mubr.f32.mxu0 0.0
          %1000 = vmatmul.mubr.f32.gmra.mrb[0].mxu0 %v933
          %v1001 = vpop.f32.mrb[0].mxu0
          %v1002 = vadd.f32 0.0, %v1001
          %v1003 = vpop.f32.mrb[0].mxu0
          %1004 = vdwg.mxu0
          %v1006 = vsel %vm502, %v866, 0
          %1008 = vmatprep.subr.mxu0 0.0
          %1009 = vmatpush1.msra.mxu0 %v929
          %1010 = vmatprep.subr.mxu0 0.0
          %1011 = vmatpush1.msra.mxu0 0.0
          %1012 = vmatprep.subr.mxu0 0.0
          %1013 = vmatpush1.msra.mxu0 0.0
          %1014 = vmatprep.subr.mxu0 0.0
          %1015 = vmatpush1.msra.mxu0 0.0
          %1016 = vmatprep.subr.mxu0 0.0
          %1017 = vmatpush1.msra.mxu0 0.0
          %1018 = vmatprep.subr.mxu0 0.0
          %1019 = vmatpush1.msra.mxu0 0.0
          %1020 = vmatprep.subr.mxu0 0.0
          %1021 = vmatpush1.msra.mxu0 0.0
          %1022 = vmatprep.subr.mxu0 0.0
          %1023 = vmatpush1.msra.mxu0 0.0
          %1024 = vmatprep.subr.mxu0 0.0
          %1025 = vmatpush1.msra.mxu0 0.0
          %1026 = vmatprep.subr.mxu0 0.0
          %1027 = vmatpush1.msra.mxu0 0.0
          %1028 = vmatprep.subr.mxu0 0.0
          %1029 = vmatpush1.msra.mxu0 0.0
          %1030 = vmatprep.subr.mxu0 0.0
          %1031 = vmatpush1.msra.mxu0 0.0
          %1032 = vmatprep.subr.mxu0 0.0
          %1033 = vmatpush1.msra.mxu0 0.0
          %1034 = vmatprep.subr.mxu0 0.0
          %1035 = vmatpush1.msra.mxu0 0.0
          %1036 = vmatprep.subr.mxu0 0.0
          %1037 = vmatpush1.msra.mxu0 0.0
          %1038 = vmatprep.subr.mxu0 0.0
          %1039 = vmatpush1.msra.mxu0 0.0
          %1040 = vmatprep.subr.mxu0 0.0
          %1041 = vmatpush1.msra.mxu0 0.0
          %1042 = vmatprep.subr.mxu0 0.0
          %1043 = vmatpush1.msra.mxu0 0.0
          %1044 = vmatprep.subr.mxu0 0.0
          %1045 = vmatpush1.msra.mxu0 0.0
          %1046 = vmatprep.subr.mxu0 0.0
          %1047 = vmatpush1.msra.mxu0 0.0
          %1048 = vmatprep.subr.mxu0 0.0
          %1049 = vmatpush1.msra.mxu0 0.0
          %1050 = vmatprep.subr.mxu0 0.0
          %1051 = vmatpush1.msra.mxu0 0.0
          %1052 = vmatprep.subr.mxu0 0.0
          %1053 = vmatpush1.msra.mxu0 0.0
          %1054 = vmatprep.subr.mxu0 0.0
          %1055 = vmatpush1.msra.mxu0 0.0
          %1056 = vmatprep.subr.mxu0 0.0
          %1057 = vmatpush1.msra.mxu0 0.0
          %1058 = vmatprep.subr.mxu0 0.0
          %1059 = vmatpush1.msra.mxu0 0.0
          %1060 = vmatprep.subr.mxu0 0.0
          %1061 = vmatpush1.msra.mxu0 0.0
          %1062 = vmatprep.subr.mxu0 0.0
          %1063 = vmatpush1.msra.mxu0 0.0
          %1064 = vmatprep.subr.mxu0 0.0
          %1065 = vmatpush1.msra.mxu0 0.0
          %1066 = vmatprep.subr.mxu0 0.0
          %1067 = vmatpush1.msra.mxu0 0.0
          %1068 = vmatprep.subr.mxu0 0.0
          %1069 = vmatpush1.msra.mxu0 0.0
          %1070 = vmatprep.subr.mxu0 0.0
          %1071 = vmatpush1.msra.mxu0 0.0
          %1072 = vmatprep.mubr.f32.mxu0 0.0
          %1073 = vmatmul.mubr.f32.gmra.mrb[0].mxu0 %v1006
          %v1074 = vpop.f32.mrb[0].mxu0
          %v1075 = vadd.f32 0.0, %v1074
          %v1076 = vpop.f32.mrb[0].mxu0
          %1077 = vdwg.mxu0
          %v1079 = vsel %vm502, %v868, 0
          %1081 = vmatprep.subr.mxu0 0.0
          %1082 = vmatpush1.msra.mxu0 %v930
          %1083 = vmatprep.subr.mxu0 0.0
          %1084 = vmatpush1.msra.mxu0 0.0
          %1085 = vmatprep.subr.mxu0 0.0
          %1086 = vmatpush1.msra.mxu0 0.0
          %1087 = vmatprep.subr.mxu0 0.0
          %1088 = vmatpush1.msra.mxu0 0.0
          %1089 = vmatprep.subr.mxu0 0.0
          %1090 = vmatpush1.msra.mxu0 0.0
          %1091 = vmatprep.subr.mxu0 0.0
          %1092 = vmatpush1.msra.mxu0 0.0
          %1093 = vmatprep.subr.mxu0 0.0
          %1094 = vmatpush1.msra.mxu0 0.0
          %1095 = vmatprep.subr.mxu0 0.0
          %1096 = vmatpush1.msra.mxu0 0.0
          %1097 = vmatprep.subr.mxu0 0.0
          %1098 = vmatpush1.msra.mxu0 0.0
          %1099 = vmatprep.subr.mxu0 0.0
          %1100 = vmatpush1.msra.mxu0 0.0
          %1101 = vmatprep.subr.mxu0 0.0
          %1102 = vmatpush1.msra.mxu0 0.0
          %1103 = vmatprep.subr.mxu0 0.0
          %1104 = vmatpush1.msra.mxu0 0.0
          %1105 = vmatprep.subr.mxu0 0.0
          %1106 = vmatpush1.msra.mxu0 0.0
          %1107 = vmatprep.subr.mxu0 0.0
          %1108 = vmatpush1.msra.mxu0 0.0
          %1109 = vmatprep.subr.mxu0 0.0
          %1110 = vmatpush1.msra.mxu0 0.0
          %1111 = vmatprep.subr.mxu0 0.0
          %1112 = vmatpush1.msra.mxu0 0.0
          %1113 = vmatprep.subr.mxu0 0.0
          %1114 = vmatpush1.msra.mxu0 0.0
          %1115 = vmatprep.subr.mxu0 0.0
          %1116 = vmatpush1.msra.mxu0 0.0
          %1117 = vmatprep.subr.mxu0 0.0
          %1118 = vmatpush1.msra.mxu0 0.0
          %1119 = vmatprep.subr.mxu0 0.0
          %1120 = vmatpush1.msra.mxu0 0.0
          %1121 = vmatprep.subr.mxu0 0.0
          %1122 = vmatpush1.msra.mxu0 0.0
          %1123 = vmatprep.subr.mxu0 0.0
          %1124 = vmatpush1.msra.mxu0 0.0
          %1125 = vmatprep.subr.mxu0 0.0
          %1126 = vmatpush1.msra.mxu0 0.0
          %1127 = vmatprep.subr.mxu0 0.0
          %1128 = vmatpush1.msra.mxu0 0.0
          %1129 = vmatprep.subr.mxu0 0.0
          %1130 = vmatpush1.msra.mxu0 0.0
          %1131 = vmatprep.subr.mxu0 0.0
          %1132 = vmatpush1.msra.mxu0 0.0
          %1133 = vmatprep.subr.mxu0 0.0
          %1134 = vmatpush1.msra.mxu0 0.0
          %1135 = vmatprep.subr.mxu0 0.0
          %1136 = vmatpush1.msra.mxu0 0.0
          %1137 = vmatprep.subr.mxu0 0.0
          %1138 = vmatpush1.msra.mxu0 0.0
          %1139 = vmatprep.subr.mxu0 0.0
          %1140 = vmatpush1.msra.mxu0 0.0
          %1141 = vmatprep.subr.mxu0 0.0
          %1142 = vmatpush1.msra.mxu0 0.0
          %1143 = vmatprep.subr.mxu0 0.0
          %1144 = vmatpush1.msra.mxu0 0.0
          %1145 = vmatprep.mubr.f32.mxu0 0.0
          %1146 = vmatmul.mubr.f32.gmra.mrb[0].mxu0 %v1079
          %v1147 = vpop.f32.mrb[0].mxu0
          %v1148 = vadd.f32 0.0, %v1147
          %v1149 = vpop.f32.mrb[0].mxu0
          %1150 = vdwg.mxu0
          %v1152 = vsel %vm502, %v870, 0
          %1154 = vmatprep.subr.mxu0 0.0
          %1155 = vmatpush1.msra.mxu0 %v931
          %1156 = vmatprep.subr.mxu0 0.0
          %1157 = vmatpush1.msra.mxu0 0.0
          %1158 = vmatprep.subr.mxu0 0.0
          %1159 = vmatpush1.msra.mxu0 0.0
          %1160 = vmatprep.subr.mxu0 0.0
          %1161 = vmatpush1.msra.mxu0 0.0
          %1162 = vmatprep.subr.mxu0 0.0
          %1163 = vmatpush1.msra.mxu0 0.0
          %1164 = vmatprep.subr.mxu0 0.0
          %1165 = vmatpush1.msra.mxu0 0.0
          %1166 = vmatprep.subr.mxu0 0.0
          %1167 = vmatpush1.msra.mxu0 0.0
          %1168 = vmatprep.subr.mxu0 0.0
          %1169 = vmatpush1.msra.mxu0 0.0
          %1170 = vmatprep.subr.mxu0 0.0
          %1171 = vmatpush1.msra.mxu0 0.0
          %1172 = vmatprep.subr.mxu0 0.0
          %1173 = vmatpush1.msra.mxu0 0.0
          %1174 = vmatprep.subr.mxu0 0.0
          %1175 = vmatpush1.msra.mxu0 0.0
          %1176 = vmatprep.subr.mxu0 0.0
          %1177 = vmatpush1.msra.mxu0 0.0
          %1178 = vmatprep.subr.mxu0 0.0
          %1179 = vmatpush1.msra.mxu0 0.0
          %1180 = vmatprep.subr.mxu0 0.0
          %1181 = vmatpush1.msra.mxu0 0.0
          %1182 = vmatprep.subr.mxu0 0.0
          %1183 = vmatpush1.msra.mxu0 0.0
          %1184 = vmatprep.subr.mxu0 0.0
          %1185 = vmatpush1.msra.mxu0 0.0
          %1186 = vmatprep.subr.mxu0 0.0
          %1187 = vmatpush1.msra.mxu0 0.0
          %1188 = vmatprep.subr.mxu0 0.0
          %1189 = vmatpush1.msra.mxu0 0.0
          %1190 = vmatprep.subr.mxu0 0.0
          %1191 = vmatpush1.msra.mxu0 0.0
          %1192 = vmatprep.subr.mxu0 0.0
          %1193 = vmatpush1.msra.mxu0 0.0
          %1194 = vmatprep.subr.mxu0 0.0
          %1195 = vmatpush1.msra.mxu0 0.0
          %1196 = vmatprep.subr.mxu0 0.0
          %1197 = vmatpush1.msra.mxu0 0.0
          %1198 = vmatprep.subr.mxu0 0.0
          %1199 = vmatpush1.msra.mxu0 0.0
          %1200 = vmatprep.subr.mxu0 0.0
          %1201 = vmatpush1.msra.mxu0 0.0
          %1202 = vmatprep.subr.mxu0 0.0
          %1203 = vmatpush1.msra.mxu0 0.0
          %1204 = vmatprep.subr.mxu0 0.0
          %1205 = vmatpush1.msra.mxu0 0.0
          %1206 = vmatprep.subr.mxu0 0.0
          %1207 = vmatpush1.msra.mxu0 0.0
          %1208 = vmatprep.subr.mxu0 0.0
          %1209 = vmatpush1.msra.mxu0 0.0
          %1210 = vmatprep.subr.mxu0 0.0
          %1211 = vmatpush1.msra.mxu0 0.0
          %1212 = vmatprep.subr.mxu0 0.0
          %1213 = vmatpush1.msra.mxu0 0.0
          %1214 = vmatprep.subr.mxu0 0.0
          %1215 = vmatpush1.msra.mxu0 0.0
          %1216 = vmatprep.subr.mxu0 0.0
          %1217 = vmatpush1.msra.mxu0 0.0
          %1218 = vmatprep.mubr.f32.mxu0 0.0
          %1219 = vmatmul.mubr.f32.gmra.mrb[0].mxu0 %v1152
          %v1220 = vpop.f32.mrb[0].mxu0
          %v1221 = vadd.f32 0.0, %v1220
          %v1222 = vpop.f32.mrb[0].mxu0
          %1223 = vdwg.mxu0
          %v1224 = vadd.f32 %v924, %v1002
          %v1225 = vadd.f32 %v925, %v1075
          %v1226 = vadd.f32 %v926, %v1148
          %v1227 = vadd.f32 %v927, %v1221
          %1228 = vst.msk [vmem:[#allocation4] sm:$0xff] %vm502, %v1224
          %1229 = vst.msk [vmem:[#allocation4 + $0x8] sm:$0xff] %vm502, %v1225
          %1230 = vst.msk [vmem:[#allocation4 + $0x10] sm:$0xff] %vm502, %v1226
          %1231 = vst.msk [vmem:[#allocation4 + $0x18] sm:$0xff] %vm502, %v1227
          %1232 = vst.msk [vmem:[#allocation2] sm:$0xff] %vm895, %v823
          %1233 = vst.msk [vmem:[#allocation2 + $0x8] sm:$0xff] %vm895, %v824
          %1234 = vst.msk [vmem:[#allocation2 + $0x10] sm:$0xff] %vm895, %v825
          %1235 = vst.msk [vmem:[#allocation2 + $0x18] sm:$0xff] %vm895, %v826
        $region76: #{tpu_custom_call.1} parent=43 // pred_fallthru
          _
        %p1236 = scmp.eq.s32.totalorder %s37, %s36
        // Predicated region
        $region77: #{tpu_custom_call.1} parent=43 // pred_check
          %p1237 = pneg %p1236
        $region78: #{tpu_custom_call.1} parent=43 // pred_check_branch
          %1239 = sbr.rel (%p1237) target = $region80
        $region79: #{tpu_custom_call.1} parent=43 // pred_region
          %v1240 = vld [vmem:[%s382] sm:$0xff]
          %v1241 = vld [vmem:[%s382 + $0x8] sm:$0xff]
          %v1242 = vld [vmem:[%s382 + $0x10] sm:$0xff]
          %v1243 = vld [vmem:[%s382 + $0x18] sm:$0xff]
          %v1244 = vld [vmem:[%s391] sm:$0xff]
          %v1245 = vld [vmem:[%s391 + $0x8] sm:$0xff]
          %v1246 = vld [vmem:[%s391 + $0x10] sm:$0xff]
          %v1247 = vld [vmem:[%s391 + $0x18] sm:$0xff]
          %v1248 = vld [vmem:[%s408] sm:$0x1]
          %v1250 = vlaneseq
          %v1251 = vshrl.u32 %v1250, 7
          %v1252 = vsub.s32 0, %v1251
          %v1253 = vrot.slane %v1248, %v1252
          %vm1255 = vcmask 64512
          %v1257 = vsel %vm1255, %v1240, 0
          %v1260 = vsel %vm1255, %v1244, 0
          %1262 = vmatprep.subr.mxu0 0.0
          %1263 = vmatpush1.xpose.msra.mxu0 %v1260
          %1264 = vmatprep.subr.mxu0 0.0
          %1265 = vmatpush1.xpose.msra.mxu0 0.0
          %1266 = vmatprep.subr.mxu0 0.0
          %1267 = vmatpush1.xpose.msra.mxu0 0.0
          %1268 = vmatprep.subr.mxu0 0.0
          %1269 = vmatpush1.xpose.msra.mxu0 0.0
          %1270 = vmatprep.subr.mxu0 0.0
          %1271 = vmatpush1.xpose.msra.mxu0 0.0
          %1272 = vmatprep.subr.mxu0 0.0
          %1273 = vmatpush1.xpose.msra.mxu0 0.0
          %1274 = vmatprep.subr.mxu0 0.0
          %1275 = vmatpush1.xpose.msra.mxu0 0.0
          %1276 = vmatprep.subr.mxu0 0.0
          %1277 = vmatpush1.xpose.msra.mxu0 0.0
          %1278 = vmatprep.subr.mxu0 0.0
          %1279 = vmatpush1.xpose.msra.mxu0 0.0
          %1280 = vmatprep.subr.mxu0 0.0
          %1281 = vmatpush1.xpose.msra.mxu0 0.0
          %1282 = vmatprep.subr.mxu0 0.0
          %1283 = vmatpush1.xpose.msra.mxu0 0.0
          %1284 = vmatprep.subr.mxu0 0.0
          %1285 = vmatpush1.xpose.msra.mxu0 0.0
          %1286 = vmatprep.subr.mxu0 0.0
          %1287 = vmatpush1.xpose.msra.mxu0 0.0
          %1288 = vmatprep.subr.mxu0 0.0
          %1289 = vmatpush1.xpose.msra.mxu0 0.0
          %1290 = vmatprep.subr.mxu0 0.0
          %1291 = vmatpush1.xpose.msra.mxu0 0.0
          %1292 = vmatprep.subr.mxu0 0.0
          %1293 = vmatpush1.xpose.msra.mxu0 0.0
          %1294 = vmatprep.subr.mxu0 0.0
          %1295 = vmatpush1.xpose.msra.mxu0 0.0
          %1296 = vmatprep.subr.mxu0 0.0
          %1297 = vmatpush1.xpose.msra.mxu0 0.0
          %1298 = vmatprep.subr.mxu0 0.0
          %1299 = vmatpush1.xpose.msra.mxu0 0.0
          %1300 = vmatprep.subr.mxu0 0.0
          %1301 = vmatpush1.xpose.msra.mxu0 0.0
          %1302 = vmatprep.subr.mxu0 0.0
          %1303 = vmatpush1.xpose.msra.mxu0 0.0
          %1304 = vmatprep.subr.mxu0 0.0
          %1305 = vmatpush1.xpose.msra.mxu0 0.0
          %1306 = vmatprep.subr.mxu0 0.0
          %1307 = vmatpush1.xpose.msra.mxu0 0.0
          %1308 = vmatprep.subr.mxu0 0.0
          %1309 = vmatpush1.xpose.msra.mxu0 0.0
          %1310 = vmatprep.subr.mxu0 0.0
          %1311 = vmatpush1.xpose.msra.mxu0 0.0
          %1312 = vmatprep.subr.mxu0 0.0
          %1313 = vmatpush1.xpose.msra.mxu0 0.0
          %1314 = vmatprep.subr.mxu0 0.0
          %1315 = vmatpush1.xpose.msra.mxu0 0.0
          %1316 = vmatprep.subr.mxu0 0.0
          %1317 = vmatpush1.xpose.msra.mxu0 0.0
          %1318 = vmatprep.subr.mxu0 0.0
          %1319 = vmatpush1.xpose.msra.mxu0 0.0
          %1320 = vmatprep.subr.mxu0 0.0
          %1321 = vmatpush1.xpose.msra.mxu0 0.0
          %1322 = vmatprep.subr.mxu0 0.0
          %1323 = vmatpush1.xpose.msra.mxu0 0.0
          %1324 = vmatprep.subr.mxu0 0.0
          %1325 = vmatpush1.xpose.msra.mxu0 0.0
          %1326 = vmatprep.mubr.f32.mxu0 0.0
          %1327 = vmatmul.mubr.f32.gmra.mrb[0].mxu0 %v1257
          %v1328 = vpop.f32.mrb[0].mxu0
          %v1329 = vadd.f32 %v1253, %v1328
          %v1330 = vpop.f32.mrb[0].mxu0
          %1331 = vdwg.mxu0
          %v1333 = vsel %vm1255, %v1241, 0
          %v1336 = vsel %vm1255, %v1245, 0
          %1338 = vmatprep.subr.mxu0 0.0
          %1339 = vmatpush1.xpose.msra.mxu0 %v1336
          %1340 = vmatprep.subr.mxu0 0.0
          %1341 = vmatpush1.xpose.msra.mxu0 0.0
          %1342 = vmatprep.subr.mxu0 0.0
          %1343 = vmatpush1.xpose.msra.mxu0 0.0
          %1344 = vmatprep.subr.mxu0 0.0
          %1345 = vmatpush1.xpose.msra.mxu0 0.0
          %1346 = vmatprep.subr.mxu0 0.0
          %1347 = vmatpush1.xpose.msra.mxu0 0.0
          %1348 = vmatprep.subr.mxu0 0.0
          %1349 = vmatpush1.xpose.msra.mxu0 0.0
          %1350 = vmatprep.subr.mxu0 0.0
          %1351 = vmatpush1.xpose.msra.mxu0 0.0
          %1352 = vmatprep.subr.mxu0 0.0
          %1353 = vmatpush1.xpose.msra.mxu0 0.0
          %1354 = vmatprep.subr.mxu0 0.0
          %1355 = vmatpush1.xpose.msra.mxu0 0.0
          %1356 = vmatprep.subr.mxu0 0.0
          %1357 = vmatpush1.xpose.msra.mxu0 0.0
          %1358 = vmatprep.subr.mxu0 0.0
          %1359 = vmatpush1.xpose.msra.mxu0 0.0
          %1360 = vmatprep.subr.mxu0 0.0
          %1361 = vmatpush1.xpose.msra.mxu0 0.0
          %1362 = vmatprep.subr.mxu0 0.0
          %1363 = vmatpush1.xpose.msra.mxu0 0.0
          %1364 = vmatprep.subr.mxu0 0.0
          %1365 = vmatpush1.xpose.msra.mxu0 0.0
          %1366 = vmatprep.subr.mxu0 0.0
          %1367 = vmatpush1.xpose.msra.mxu0 0.0
          %1368 = vmatprep.subr.mxu0 0.0
          %1369 = vmatpush1.xpose.msra.mxu0 0.0
          %1370 = vmatprep.subr.mxu0 0.0
          %1371 = vmatpush1.xpose.msra.mxu0 0.0
          %1372 = vmatprep.subr.mxu0 0.0
          %1373 = vmatpush1.xpose.msra.mxu0 0.0
          %1374 = vmatprep.subr.mxu0 0.0
          %1375 = vmatpush1.xpose.msra.mxu0 0.0
          %1376 = vmatprep.subr.mxu0 0.0
          %1377 = vmatpush1.xpose.msra.mxu0 0.0
          %1378 = vmatprep.subr.mxu0 0.0
          %1379 = vmatpush1.xpose.msra.mxu0 0.0
          %1380 = vmatprep.subr.mxu0 0.0
          %1381 = vmatpush1.xpose.msra.mxu0 0.0
          %1382 = vmatprep.subr.mxu0 0.0
          %1383 = vmatpush1.xpose.msra.mxu0 0.0
          %1384 = vmatprep.subr.mxu0 0.0
          %1385 = vmatpush1.xpose.msra.mxu0 0.0
          %1386 = vmatprep.subr.mxu0 0.0
          %1387 = vmatpush1.xpose.msra.mxu0 0.0
          %1388 = vmatprep.subr.mxu0 0.0
          %1389 = vmatpush1.xpose.msra.mxu0 0.0
          %1390 = vmatprep.subr.mxu0 0.0
          %1391 = vmatpush1.xpose.msra.mxu0 0.0
          %1392 = vmatprep.subr.mxu0 0.0
          %1393 = vmatpush1.xpose.msra.mxu0 0.0
          %1394 = vmatprep.subr.mxu0 0.0
          %1395 = vmatpush1.xpose.msra.mxu0 0.0
          %1396 = vmatprep.subr.mxu0 0.0
          %1397 = vmatpush1.xpose.msra.mxu0 0.0
          %1398 = vmatprep.subr.mxu0 0.0
          %1399 = vmatpush1.xpose.msra.mxu0 0.0
          %1400 = vmatprep.subr.mxu0 0.0
          %1401 = vmatpush1.xpose.msra.mxu0 0.0
          %1402 = vmatprep.mubr.f32.mxu0 0.0
          %1403 = vmatmul.mubr.f32.gmra.mrb[0].mxu0 %v1333
          %v1404 = vpop.f32.mrb[0].mxu0
          %v1405 = vadd.f32 %v1253, %v1404
          %v1406 = vpop.f32.mrb[0].mxu0
          %1407 = vdwg.mxu0
          %v1409 = vsel %vm1255, %v1242, 0
          %v1412 = vsel %vm1255, %v1246, 0
          %1414 = vmatprep.subr.mxu0 0.0
          %1415 = vmatpush1.xpose.msra.mxu0 %v1412
          %1416 = vmatprep.subr.mxu0 0.0
          %1417 = vmatpush1.xpose.msra.mxu0 0.0
          %1418 = vmatprep.subr.mxu0 0.0
          %1419 = vmatpush1.xpose.msra.mxu0 0.0
          %1420 = vmatprep.subr.mxu0 0.0
          %1421 = vmatpush1.xpose.msra.mxu0 0.0
          %1422 = vmatprep.subr.mxu0 0.0
          %1423 = vmatpush1.xpose.msra.mxu0 0.0
          %1424 = vmatprep.subr.mxu0 0.0
          %1425 = vmatpush1.xpose.msra.mxu0 0.0
          %1426 = vmatprep.subr.mxu0 0.0
          %1427 = vmatpush1.xpose.msra.mxu0 0.0
          %1428 = vmatprep.subr.mxu0 0.0
          %1429 = vmatpush1.xpose.msra.mxu0 0.0
          %1430 = vmatprep.subr.mxu0 0.0
          %1431 = vmatpush1.xpose.msra.mxu0 0.0
          %1432 = vmatprep.subr.mxu0 0.0
          %1433 = vmatpush1.xpose.msra.mxu0 0.0
          %1434 = vmatprep.subr.mxu0 0.0
          %1435 = vmatpush1.xpose.msra.mxu0 0.0
          %1436 = vmatprep.subr.mxu0 0.0
          %1437 = vmatpush1.xpose.msra.mxu0 0.0
          %1438 = vmatprep.subr.mxu0 0.0
          %1439 = vmatpush1.xpose.msra.mxu0 0.0
          %1440 = vmatprep.subr.mxu0 0.0
          %1441 = vmatpush1.xpose.msra.mxu0 0.0
          %1442 = vmatprep.subr.mxu0 0.0
          %1443 = vmatpush1.xpose.msra.mxu0 0.0
          %1444 = vmatprep.subr.mxu0 0.0
          %1445 = vmatpush1.xpose.msra.mxu0 0.0
          %1446 = vmatprep.subr.mxu0 0.0
          %1447 = vmatpush1.xpose.msra.mxu0 0.0
          %1448 = vmatprep.subr.mxu0 0.0
          %1449 = vmatpush1.xpose.msra.mxu0 0.0
          %1450 = vmatprep.subr.mxu0 0.0
          %1451 = vmatpush1.xpose.msra.mxu0 0.0
          %1452 = vmatprep.subr.mxu0 0.0
          %1453 = vmatpush1.xpose.msra.mxu0 0.0
          %1454 = vmatprep.subr.mxu0 0.0
          %1455 = vmatpush1.xpose.msra.mxu0 0.0
          %1456 = vmatprep.subr.mxu0 0.0
          %1457 = vmatpush1.xpose.msra.mxu0 0.0
          %1458 = vmatprep.subr.mxu0 0.0
          %1459 = vmatpush1.xpose.msra.mxu0 0.0
          %1460 = vmatprep.subr.mxu0 0.0
          %1461 = vmatpush1.xpose.msra.mxu0 0.0
          %1462 = vmatprep.subr.mxu0 0.0
          %1463 = vmatpush1.xpose.msra.mxu0 0.0
          %1464 = vmatprep.subr.mxu0 0.0
          %1465 = vmatpush1.xpose.msra.mxu0 0.0
          %1466 = vmatprep.subr.mxu0 0.0
          %1467 = vmatpush1.xpose.msra.mxu0 0.0
          %1468 = vmatprep.subr.mxu0 0.0
          %1469 = vmatpush1.xpose.msra.mxu0 0.0
          %1470 = vmatprep.subr.mxu0 0.0
          %1471 = vmatpush1.xpose.msra.mxu0 0.0
          %1472 = vmatprep.subr.mxu0 0.0
          %1473 = vmatpush1.xpose.msra.mxu0 0.0
          %1474 = vmatprep.subr.mxu0 0.0
          %1475 = vmatpush1.xpose.msra.mxu0 0.0
          %1476 = vmatprep.subr.mxu0 0.0
          %1477 = vmatpush1.xpose.msra.mxu0 0.0
          %1478 = vmatprep.mubr.f32.mxu0 0.0
          %1479 = vmatmul.mubr.f32.gmra.mrb[0].mxu0 %v1409
          %v1480 = vpop.f32.mrb[0].mxu0
          %v1481 = vadd.f32 %v1253, %v1480
          %v1482 = vpop.f32.mrb[0].mxu0
          %1483 = vdwg.mxu0
          %v1485 = vsel %vm1255, %v1243, 0
          %v1488 = vsel %vm1255, %v1247, 0
          %1490 = vmatprep.subr.mxu0 0.0
          %1491 = vmatpush1.xpose.msra.mxu0 %v1488
          %1492 = vmatprep.subr.mxu0 0.0
          %1493 = vmatpush1.xpose.msra.mxu0 0.0
          %1494 = vmatprep.subr.mxu0 0.0
          %1495 = vmatpush1.xpose.msra.mxu0 0.0
          %1496 = vmatprep.subr.mxu0 0.0
          %1497 = vmatpush1.xpose.msra.mxu0 0.0
          %1498 = vmatprep.subr.mxu0 0.0
          %1499 = vmatpush1.xpose.msra.mxu0 0.0
          %1500 = vmatprep.subr.mxu0 0.0
          %1501 = vmatpush1.xpose.msra.mxu0 0.0
          %1502 = vmatprep.subr.mxu0 0.0
          %1503 = vmatpush1.xpose.msra.mxu0 0.0
          %1504 = vmatprep.subr.mxu0 0.0
          %1505 = vmatpush1.xpose.msra.mxu0 0.0
          %1506 = vmatprep.subr.mxu0 0.0
          %1507 = vmatpush1.xpose.msra.mxu0 0.0
          %1508 = vmatprep.subr.mxu0 0.0
          %1509 = vmatpush1.xpose.msra.mxu0 0.0
          %1510 = vmatprep.subr.mxu0 0.0
          %1511 = vmatpush1.xpose.msra.mxu0 0.0
          %1512 = vmatprep.subr.mxu0 0.0
          %1513 = vmatpush1.xpose.msra.mxu0 0.0
          %1514 = vmatprep.subr.mxu0 0.0
          %1515 = vmatpush1.xpose.msra.mxu0 0.0
          %1516 = vmatprep.subr.mxu0 0.0
          %1517 = vmatpush1.xpose.msra.mxu0 0.0
          %1518 = vmatprep.subr.mxu0 0.0
          %1519 = vmatpush1.xpose.msra.mxu0 0.0
          %1520 = vmatprep.subr.mxu0 0.0
          %1521 = vmatpush1.xpose.msra.mxu0 0.0
          %1522 = vmatprep.subr.mxu0 0.0
          %1523 = vmatpush1.xpose.msra.mxu0 0.0
          %1524 = vmatprep.subr.mxu0 0.0
          %1525 = vmatpush1.xpose.msra.mxu0 0.0
          %1526 = vmatprep.subr.mxu0 0.0
          %1527 = vmatpush1.xpose.msra.mxu0 0.0
          %1528 = vmatprep.subr.mxu0 0.0
          %1529 = vmatpush1.xpose.msra.mxu0 0.0
          %1530 = vmatprep.subr.mxu0 0.0
          %1531 = vmatpush1.xpose.msra.mxu0 0.0
          %1532 = vmatprep.subr.mxu0 0.0
          %1533 = vmatpush1.xpose.msra.mxu0 0.0
          %1534 = vmatprep.subr.mxu0 0.0
          %1535 = vmatpush1.xpose.msra.mxu0 0.0
          %1536 = vmatprep.subr.mxu0 0.0
          %1537 = vmatpush1.xpose.msra.mxu0 0.0
          %1538 = vmatprep.subr.mxu0 0.0
          %1539 = vmatpush1.xpose.msra.mxu0 0.0
          %1540 = vmatprep.subr.mxu0 0.0
          %1541 = vmatpush1.xpose.msra.mxu0 0.0
          %1542 = vmatprep.subr.mxu0 0.0
          %1543 = vmatpush1.xpose.msra.mxu0 0.0
          %1544 = vmatprep.subr.mxu0 0.0
          %1545 = vmatpush1.xpose.msra.mxu0 0.0
          %1546 = vmatprep.subr.mxu0 0.0
          %1547 = vmatpush1.xpose.msra.mxu0 0.0
          %1548 = vmatprep.subr.mxu0 0.0
          %1549 = vmatpush1.xpose.msra.mxu0 0.0
          %1550 = vmatprep.subr.mxu0 0.0
          %1551 = vmatpush1.xpose.msra.mxu0 0.0
          %1552 = vmatprep.subr.mxu0 0.0
          %1553 = vmatpush1.xpose.msra.mxu0 0.0
          %1554 = vmatprep.mubr.f32.mxu0 0.0
          %1555 = vmatmul.mubr.f32.gmra.mrb[0].mxu0 %v1485
          %v1556 = vpop.f32.mrb[0].mxu0
          %v1557 = vadd.f32 %v1253, %v1556
          %v1558 = vpop.f32.mrb[0].mxu0
          %1559 = vdwg.mxu0
          %v1560 = vlaneseq
          %v1561 = vshrl.u32 %v1560, 7
          %v1562 = vlaneseq
          %v1563 = vand.u32 %v1562, 127
          %vm1564 = vcmp.gt.s32.totalorder %v1563, %v1561
          %v1565 = vsel %vm1564, -1e+30, 0.0
          %v1566 = vadd.f32 %v1329, %v1565
          %v1567 = vadd.f32 %v1405, %v1565
          %v1568 = vadd.f32 %v1481, %v1565
          %v1569 = vadd.f32 %v1557, %v1565
          %v1570 = vld [vmem:[#allocation2] sm:$0xff]
          %v1571 = vld [vmem:[#allocation2 + $0x8] sm:$0xff]
          %v1572 = vld [vmem:[#allocation2 + $0x10] sm:$0xff]
          %v1573 = vld [vmem:[#allocation2 + $0x18] sm:$0xff]
          %v1574 = vsel %vm1255, %v1566, -inf
          %1575 = vmax.xlane.f32.xlu0 %v1574
          %v1576 = vpop.xlane.xlu0 %1575
          %v1577 = vsel %vm1255, %v1567, -inf
          %1578 = vmax.xlane.f32.xlu0 %v1577
          %v1579 = vpop.xlane.xlu0 %1578
          %v1580 = vsel %vm1255, %v1568, -inf
          %1581 = vmax.xlane.f32.xlu0 %v1580
          %v1582 = vpop.xlane.xlu0 %1581
          %v1583 = vsel %vm1255, %v1569, -inf
          %1584 = vmax.xlane.f32.xlu0 %v1583
          %v1585 = vpop.xlane.xlu0 %1584
          %v1586 = vmax.f32 %v1570, %v1576
          %v1587 = vmax.f32 %v1571, %v1579
          %v1588 = vmax.f32 %v1572, %v1582
          %v1589 = vmax.f32 %v1573, %v1585
          %v1590 = vsub.f32 %v1570, %v1586
          %v1591 = vsub.f32 %v1571, %v1587
          %v1592 = vsub.f32 %v1572, %v1588
          %v1593 = vsub.f32 %v1573, %v1589
          %v1594 = vmul.f32 %v1590, 1.442695
          %v1595 = vpow.pop %v1594
          %v1596 = vmul.f32 %v1591, 1.442695
          %v1597 = vpow.pop %v1596
          %v1598 = vmul.f32 %v1592, 1.442695
          %v1599 = vpow.pop %v1598
          %v1600 = vmul.f32 %v1593, 1.442695
          %v1601 = vpow.pop %v1600
          %1603 = vset.pattern.permute.xlu0 0
          %1604 = vperm.xlu0 %1603, %v1586
          %v1605 = vpop.permute.xlu0 %1604
          %1608 = vset.pattern.permute.xlu0 0
          %1609 = vperm.xlu0 %1608, %v1587
          %v1610 = vpop.permute.xlu0 %1609
          %1613 = vset.pattern.permute.xlu0 0
          %1614 = vperm.xlu0 %1613, %v1588
          %v1615 = vpop.permute.xlu0 %1614
          %1618 = vset.pattern.permute.xlu0 0
          %1619 = vperm.xlu0 %1618, %v1589
          %v1620 = vpop.permute.xlu0 %1619
          %v1622 = vsub.f32 %v1566, %v1605
          %v1623 = vsub.f32 %v1567, %v1610
          %v1624 = vsub.f32 %v1568, %v1615
          %v1625 = vsub.f32 %v1569, %v1620
          %v1626 = vmul.f32 %v1622, 1.442695
          %v1627 = vpow.pop %v1626
          %v1628 = vmul.f32 %v1623, 1.442695
          %v1629 = vpow.pop %v1628
          %v1630 = vmul.f32 %v1624, 1.442695
          %v1631 = vpow.pop %v1630
          %v1632 = vmul.f32 %v1625, 1.442695
          %v1633 = vpow.pop %v1632
          %v1634 = vld [vmem:[#allocation3] sm:$0xff]
          %v1635 = vld [vmem:[#allocation3 + $0x8] sm:$0xff]
          %v1636 = vld [vmem:[#allocation3 + $0x10] sm:$0xff]
          %v1637 = vld [vmem:[#allocation3 + $0x18] sm:$0xff]
          %v1638 = vmul.f32 %v1595, %v1634
          %v1639 = vmul.f32 %v1597, %v1635
          %v1640 = vmul.f32 %v1599, %v1636
          %v1641 = vmul.f32 %v1601, %v1637
          %v1642 = vsel %vm1255, %v1627, 0.0
          %1643 = vadd.xlane.f32.xlu0 %v1642
          %v1644 = vpop.xlane.xlu0 %1643
          %v1645 = vsel %vm1255, %v1629, 0.0
          %1646 = vadd.xlane.f32.xlu0 %v1645
          %v1647 = vpop.xlane.xlu0 %1646
          %v1648 = vsel %vm1255, %v1631, 0.0
          %1649 = vadd.xlane.f32.xlu0 %v1648
          %v1650 = vpop.xlane.xlu0 %1649
          %v1651 = vsel %vm1255, %v1633, 0.0
          %1652 = vadd.xlane.f32.xlu0 %v1651
          %v1653 = vpop.xlane.xlu0 %1652
          %v1654 = vadd.f32 %v1638, %v1644
          %v1655 = vadd.f32 %v1639, %v1647
          %v1656 = vadd.f32 %v1640, %v1650
          %v1657 = vadd.f32 %v1641, %v1653
          %vm1658 = vcmask 7168
          %1659 = vst.msk [vmem:[#allocation3] sm:$0xff] %vm1658, %v1654
          %1660 = vst.msk [vmem:[#allocation3 + $0x8] sm:$0xff] %vm1658, %v1655
          %1661 = vst.msk [vmem:[#allocation3 + $0x10] sm:$0xff] %vm1658, %v1656
          %1662 = vst.msk [vmem:[#allocation3 + $0x18] sm:$0xff] %vm1658, %v1657
          %v1663 = vld [vmem:[#allocation4] sm:$0xff]
          %v1664 = vld [vmem:[#allocation4 + $0x8] sm:$0xff]
          %v1665 = vld [vmem:[#allocation4 + $0x10] sm:$0xff]
          %v1666 = vld [vmem:[#allocation4 + $0x18] sm:$0xff]
          %1668 = vset.pattern.permute.xlu0 0
          %1669 = vperm.xlu0 %1668, %v1595
          %v1670 = vpop.permute.xlu0 %1669
          %1673 = vset.pattern.permute.xlu0 0
          %1674 = vperm.xlu0 %1673, %v1597
          %v1675 = vpop.permute.xlu0 %1674
          %1678 = vset.pattern.permute.xlu0 0
          %1679 = vperm.xlu0 %1678, %v1599
          %v1680 = vpop.permute.xlu0 %1679
          %1683 = vset.pattern.permute.xlu0 0
          %1684 = vperm.xlu0 %1683, %v1601
          %v1685 = vpop.permute.xlu0 %1684
          %v1687 = vmul.f32 %v1670, %v1663
          %v1688 = vmul.f32 %v1675, %v1664
          %v1689 = vmul.f32 %v1680, %v1665
          %v1690 = vmul.f32 %v1685, %v1666
          %v1691 = vld [vmem:[%s400] sm:$0xff]
          %v1692 = vld [vmem:[%s400 + $0x8] sm:$0xff]
          %v1693 = vld [vmem:[%s400 + $0x10] sm:$0xff]
          %v1694 = vld [vmem:[%s400 + $0x18] sm:$0xff]
          %v1696 = vsel %vm1255, %v1627, 0
          %1698 = vmatprep.subr.mxu0 0.0
          %1699 = vmatpush1.msra.mxu0 %v1691
          %1700 = vmatprep.subr.mxu0 0.0
          %1701 = vmatpush1.msra.mxu0 0.0
          %1702 = vmatprep.subr.mxu0 0.0
          %1703 = vmatpush1.msra.mxu0 0.0
          %1704 = vmatprep.subr.mxu0 0.0
          %1705 = vmatpush1.msra.mxu0 0.0
          %1706 = vmatprep.subr.mxu0 0.0
          %1707 = vmatpush1.msra.mxu0 0.0
          %1708 = vmatprep.subr.mxu0 0.0
          %1709 = vmatpush1.msra.mxu0 0.0
          %1710 = vmatprep.subr.mxu0 0.0
          %1711 = vmatpush1.msra.mxu0 0.0
          %1712 = vmatprep.subr.mxu0 0.0
          %1713 = vmatpush1.msra.mxu0 0.0
          %1714 = vmatprep.subr.mxu0 0.0
          %1715 = vmatpush1.msra.mxu0 0.0
          %1716 = vmatprep.subr.mxu0 0.0
          %1717 = vmatpush1.msra.mxu0 0.0
          %1718 = vmatprep.subr.mxu0 0.0
          %1719 = vmatpush1.msra.mxu0 0.0
          %1720 = vmatprep.subr.mxu0 0.0
          %1721 = vmatpush1.msra.mxu0 0.0
          %1722 = vmatprep.subr.mxu0 0.0
          %1723 = vmatpush1.msra.mxu0 0.0
          %1724 = vmatprep.subr.mxu0 0.0
          %1725 = vmatpush1.msra.mxu0 0.0
          %1726 = vmatprep.subr.mxu0 0.0
          %1727 = vmatpush1.msra.mxu0 0.0
          %1728 = vmatprep.subr.mxu0 0.0
          %1729 = vmatpush1.msra.mxu0 0.0
          %1730 = vmatprep.subr.mxu0 0.0
          %1731 = vmatpush1.msra.mxu0 0.0
          %1732 = vmatprep.subr.mxu0 0.0
          %1733 = vmatpush1.msra.mxu0 0.0
          %1734 = vmatprep.subr.mxu0 0.0
          %1735 = vmatpush1.msra.mxu0 0.0
          %1736 = vmatprep.subr.mxu0 0.0
          %1737 = vmatpush1.msra.mxu0 0.0
          %1738 = vmatprep.subr.mxu0 0.0
          %1739 = vmatpush1.msra.mxu0 0.0
          %1740 = vmatprep.subr.mxu0 0.0
          %1741 = vmatpush1.msra.mxu0 0.0
          %1742 = vmatprep.subr.mxu0 0.0
          %1743 = vmatpush1.msra.mxu0 0.0
          %1744 = vmatprep.subr.mxu0 0.0
          %1745 = vmatpush1.msra.mxu0 0.0
          %1746 = vmatprep.subr.mxu0 0.0
          %1747 = vmatpush1.msra.mxu0 0.0
          %1748 = vmatprep.subr.mxu0 0.0
          %1749 = vmatpush1.msra.mxu0 0.0
          %1750 = vmatprep.subr.mxu0 0.0
          %1751 = vmatpush1.msra.mxu0 0.0
          %1752 = vmatprep.subr.mxu0 0.0
          %1753 = vmatpush1.msra.mxu0 0.0
          %1754 = vmatprep.subr.mxu0 0.0
          %1755 = vmatpush1.msra.mxu0 0.0
          %1756 = vmatprep.subr.mxu0 0.0
          %1757 = vmatpush1.msra.mxu0 0.0
          %1758 = vmatprep.subr.mxu0 0.0
          %1759 = vmatpush1.msra.mxu0 0.0
          %1760 = vmatprep.subr.mxu0 0.0
          %1761 = vmatpush1.msra.mxu0 0.0
          %1762 = vmatprep.mubr.f32.mxu0 0.0
          %1763 = vmatmul.mubr.f32.gmra.mrb[0].mxu0 %v1696
          %v1764 = vpop.f32.mrb[0].mxu0
          %v1765 = vadd.f32 0.0, %v1764
          %v1766 = vpop.f32.mrb[0].mxu0
          %1767 = vdwg.mxu0
          %v1769 = vsel %vm1255, %v1629, 0
          %1771 = vmatprep.subr.mxu0 0.0
          %1772 = vmatpush1.msra.mxu0 %v1692
          %1773 = vmatprep.subr.mxu0 0.0
          %1774 = vmatpush1.msra.mxu0 0.0
          %1775 = vmatprep.subr.mxu0 0.0
          %1776 = vmatpush1.msra.mxu0 0.0
          %1777 = vmatprep.subr.mxu0 0.0
          %1778 = vmatpush1.msra.mxu0 0.0
          %1779 = vmatprep.subr.mxu0 0.0
          %1780 = vmatpush1.msra.mxu0 0.0
          %1781 = vmatprep.subr.mxu0 0.0
          %1782 = vmatpush1.msra.mxu0 0.0
          %1783 = vmatprep.subr.mxu0 0.0
          %1784 = vmatpush1.msra.mxu0 0.0
          %1785 = vmatprep.subr.mxu0 0.0
          %1786 = vmatpush1.msra.mxu0 0.0
          %1787 = vmatprep.subr.mxu0 0.0
          %1788 = vmatpush1.msra.mxu0 0.0
          %1789 = vmatprep.subr.mxu0 0.0
          %1790 = vmatpush1.msra.mxu0 0.0
          %1791 = vmatprep.subr.mxu0 0.0
          %1792 = vmatpush1.msra.mxu0 0.0
          %1793 = vmatprep.subr.mxu0 0.0
          %1794 = vmatpush1.msra.mxu0 0.0
          %1795 = vmatprep.subr.mxu0 0.0
          %1796 = vmatpush1.msra.mxu0 0.0
          %1797 = vmatprep.subr.mxu0 0.0
          %1798 = vmatpush1.msra.mxu0 0.0
          %1799 = vmatprep.subr.mxu0 0.0
          %1800 = vmatpush1.msra.mxu0 0.0
          %1801 = vmatprep.subr.mxu0 0.0
          %1802 = vmatpush1.msra.mxu0 0.0
          %1803 = vmatprep.subr.mxu0 0.0
          %1804 = vmatpush1.msra.mxu0 0.0
          %1805 = vmatprep.subr.mxu0 0.0
          %1806 = vmatpush1.msra.mxu0 0.0
          %1807 = vmatprep.subr.mxu0 0.0
          %1808 = vmatpush1.msra.mxu0 0.0
          %1809 = vmatprep.subr.mxu0 0.0
          %1810 = vmatpush1.msra.mxu0 0.0
          %1811 = vmatprep.subr.mxu0 0.0
          %1812 = vmatpush1.msra.mxu0 0.0
          %1813 = vmatprep.subr.mxu0 0.0
          %1814 = vmatpush1.msra.mxu0 0.0
          %1815 = vmatprep.subr.mxu0 0.0
          %1816 = vmatpush1.msra.mxu0 0.0
          %1817 = vmatprep.subr.mxu0 0.0
          %1818 = vmatpush1.msra.mxu0 0.0
          %1819 = vmatprep.subr.mxu0 0.0
          %1820 = vmatpush1.msra.mxu0 0.0
          %1821 = vmatprep.subr.mxu0 0.0
          %1822 = vmatpush1.msra.mxu0 0.0
          %1823 = vmatprep.subr.mxu0 0.0
          %1824 = vmatpush1.msra.mxu0 0.0
          %1825 = vmatprep.subr.mxu0 0.0
          %1826 = vmatpush1.msra.mxu0 0.0
          %1827 = vmatprep.subr.mxu0 0.0
          %1828 = vmatpush1.msra.mxu0 0.0
          %1829 = vmatprep.subr.mxu0 0.0
          %1830 = vmatpush1.msra.mxu0 0.0
          %1831 = vmatprep.subr.mxu0 0.0
          %1832 = vmatpush1.msra.mxu0 0.0
          %1833 = vmatprep.subr.mxu0 0.0
          %1834 = vmatpush1.msra.mxu0 0.0
          %1835 = vmatprep.mubr.f32.mxu0 0.0
          %1836 = vmatmul.mubr.f32.gmra.mrb[0].mxu0 %v1769
          %v1837 = vpop.f32.mrb[0].mxu0
          %v1838 = vadd.f32 0.0, %v1837
          %v1839 = vpop.f32.mrb[0].mxu0
          %1840 = vdwg.mxu0
          %v1842 = vsel %vm1255, %v1631, 0
          %1844 = vmatprep.subr.mxu0 0.0
          %1845 = vmatpush1.msra.mxu0 %v1693
          %1846 = vmatprep.subr.mxu0 0.0
          %1847 = vmatpush1.msra.mxu0 0.0
          %1848 = vmatprep.subr.mxu0 0.0
          %1849 = vmatpush1.msra.mxu0 0.0
          %1850 = vmatprep.subr.mxu0 0.0
          %1851 = vmatpush1.msra.mxu0 0.0
          %1852 = vmatprep.subr.mxu0 0.0
          %1853 = vmatpush1.msra.mxu0 0.0
          %1854 = vmatprep.subr.mxu0 0.0
          %1855 = vmatpush1.msra.mxu0 0.0
          %1856 = vmatprep.subr.mxu0 0.0
          %1857 = vmatpush1.msra.mxu0 0.0
          %1858 = vmatprep.subr.mxu0 0.0
          %1859 = vmatpush1.msra.mxu0 0.0
          %1860 = vmatprep.subr.mxu0 0.0
          %1861 = vmatpush1.msra.mxu0 0.0
          %1862 = vmatprep.subr.mxu0 0.0
          %1863 = vmatpush1.msra.mxu0 0.0
          %1864 = vmatprep.subr.mxu0 0.0
          %1865 = vmatpush1.msra.mxu0 0.0
          %1866 = vmatprep.subr.mxu0 0.0
          %1867 = vmatpush1.msra.mxu0 0.0
          %1868 = vmatprep.subr.mxu0 0.0
          %1869 = vmatpush1.msra.mxu0 0.0
          %1870 = vmatprep.subr.mxu0 0.0
          %1871 = vmatpush1.msra.mxu0 0.0
          %1872 = vmatprep.subr.mxu0 0.0
          %1873 = vmatpush1.msra.mxu0 0.0
          %1874 = vmatprep.subr.mxu0 0.0
          %1875 = vmatpush1.msra.mxu0 0.0
          %1876 = vmatprep.subr.mxu0 0.0
          %1877 = vmatpush1.msra.mxu0 0.0
          %1878 = vmatprep.subr.mxu0 0.0
          %1879 = vmatpush1.msra.mxu0 0.0
          %1880 = vmatprep.subr.mxu0 0.0
          %1881 = vmatpush1.msra.mxu0 0.0
          %1882 = vmatprep.subr.mxu0 0.0
          %1883 = vmatpush1.msra.mxu0 0.0
          %1884 = vmatprep.subr.mxu0 0.0
          %1885 = vmatpush1.msra.mxu0 0.0
          %1886 = vmatprep.subr.mxu0 0.0
          %1887 = vmatpush1.msra.mxu0 0.0
          %1888 = vmatprep.subr.mxu0 0.0
          %1889 = vmatpush1.msra.mxu0 0.0
          %1890 = vmatprep.subr.mxu0 0.0
          %1891 = vmatpush1.msra.mxu0 0.0
          %1892 = vmatprep.subr.mxu0 0.0
          %1893 = vmatpush1.msra.mxu0 0.0
          %1894 = vmatprep.subr.mxu0 0.0
          %1895 = vmatpush1.msra.mxu0 0.0
          %1896 = vmatprep.subr.mxu0 0.0
          %1897 = vmatpush1.msra.mxu0 0.0
          %1898 = vmatprep.subr.mxu0 0.0
          %1899 = vmatpush1.msra.mxu0 0.0
          %1900 = vmatprep.subr.mxu0 0.0
          %1901 = vmatpush1.msra.mxu0 0.0
          %1902 = vmatprep.subr.mxu0 0.0
          %1903 = vmatpush1.msra.mxu0 0.0
          %1904 = vmatprep.subr.mxu0 0.0
          %1905 = vmatpush1.msra.mxu0 0.0
          %1906 = vmatprep.subr.mxu0 0.0
          %1907 = vmatpush1.msra.mxu0 0.0
          %1908 = vmatprep.mubr.f32.mxu0 0.0
          %1909 = vmatmul.mubr.f32.gmra.mrb[0].mxu0 %v1842
          %v1910 = vpop.f32.mrb[0].mxu0
          %v1911 = vadd.f32 0.0, %v1910
          %v1912 = vpop.f32.mrb[0].mxu0
          %1913 = vdwg.mxu0
          %v1915 = vsel %vm1255, %v1633, 0
          %1917 = vmatprep.subr.mxu0 0.0
          %1918 = vmatpush1.msra.mxu0 %v1694
          %1919 = vmatprep.subr.mxu0 0.0
          %1920 = vmatpush1.msra.mxu0 0.0
          %1921 = vmatprep.subr.mxu0 0.0
          %1922 = vmatpush1.msra.mxu0 0.0
          %1923 = vmatprep.subr.mxu0 0.0
          %1924 = vmatpush1.msra.mxu0 0.0
          %1925 = vmatprep.subr.mxu0 0.0
          %1926 = vmatpush1.msra.mxu0 0.0
          %1927 = vmatprep.subr.mxu0 0.0
          %1928 = vmatpush1.msra.mxu0 0.0
          %1929 = vmatprep.subr.mxu0 0.0
          %1930 = vmatpush1.msra.mxu0 0.0
          %1931 = vmatprep.subr.mxu0 0.0
          %1932 = vmatpush1.msra.mxu0 0.0
          %1933 = vmatprep.subr.mxu0 0.0
          %1934 = vmatpush1.msra.mxu0 0.0
          %1935 = vmatprep.subr.mxu0 0.0
          %1936 = vmatpush1.msra.mxu0 0.0
          %1937 = vmatprep.subr.mxu0 0.0
          %1938 = vmatpush1.msra.mxu0 0.0
          %1939 = vmatprep.subr.mxu0 0.0
          %1940 = vmatpush1.msra.mxu0 0.0
          %1941 = vmatprep.subr.mxu0 0.0
          %1942 = vmatpush1.msra.mxu0 0.0
          %1943 = vmatprep.subr.mxu0 0.0
          %1944 = vmatpush1.msra.mxu0 0.0
          %1945 = vmatprep.subr.mxu0 0.0
          %1946 = vmatpush1.msra.mxu0 0.0
          %1947 = vmatprep.subr.mxu0 0.0
          %1948 = vmatpush1.msra.mxu0 0.0
          %1949 = vmatprep.subr.mxu0 0.0
          %1950 = vmatpush1.msra.mxu0 0.0
          %1951 = vmatprep.subr.mxu0 0.0
          %1952 = vmatpush1.msra.mxu0 0.0
          %1953 = vmatprep.subr.mxu0 0.0
          %1954 = vmatpush1.msra.mxu0 0.0
          %1955 = vmatprep.subr.mxu0 0.0
          %1956 = vmatpush1.msra.mxu0 0.0
          %1957 = vmatprep.subr.mxu0 0.0
          %1958 = vmatpush1.msra.mxu0 0.0
          %1959 = vmatprep.subr.mxu0 0.0
          %1960 = vmatpush1.msra.mxu0 0.0
          %1961 = vmatprep.subr.mxu0 0.0
          %1962 = vmatpush1.msra.mxu0 0.0
          %1963 = vmatprep.subr.mxu0 0.0
          %1964 = vmatpush1.msra.mxu0 0.0
          %1965 = vmatprep.subr.mxu0 0.0
          %1966 = vmatpush1.msra.mxu0 0.0
          %1967 = vmatprep.subr.mxu0 0.0
          %1968 = vmatpush1.msra.mxu0 0.0
          %1969 = vmatprep.subr.mxu0 0.0
          %1970 = vmatpush1.msra.mxu0 0.0
          %1971 = vmatprep.subr.mxu0 0.0
          %1972 = vmatpush1.msra.mxu0 0.0
          %1973 = vmatprep.subr.mxu0 0.0
          %1974 = vmatpush1.msra.mxu0 0.0
          %1975 = vmatprep.subr.mxu0 0.0
          %1976 = vmatpush1.msra.mxu0 0.0
          %1977 = vmatprep.subr.mxu0 0.0
          %1978 = vmatpush1.msra.mxu0 0.0
          %1979 = vmatprep.subr.mxu0 0.0
          %1980 = vmatpush1.msra.mxu0 0.0
          %1981 = vmatprep.mubr.f32.mxu0 0.0
          %1982 = vmatmul.mubr.f32.gmra.mrb[0].mxu0 %v1915
          %v1983 = vpop.f32.mrb[0].mxu0
          %v1984 = vadd.f32 0.0, %v1983
          %v1985 = vpop.f32.mrb[0].mxu0
          %1986 = vdwg.mxu0
          %v1987 = vadd.f32 %v1687, %v1765
          %v1988 = vadd.f32 %v1688, %v1838
          %v1989 = vadd.f32 %v1689, %v1911
          %v1990 = vadd.f32 %v1690, %v1984
          %1991 = vst.msk [vmem:[#allocation4] sm:$0xff] %vm1255, %v1987
          %1992 = vst.msk [vmem:[#allocation4 + $0x8] sm:$0xff] %vm1255, %v1988
          %1993 = vst.msk [vmem:[#allocation4 + $0x10] sm:$0xff] %vm1255, %v1989
          %1994 = vst.msk [vmem:[#allocation4 + $0x18] sm:$0xff] %vm1255, %v1990
          %1995 = vst.msk [vmem:[#allocation2] sm:$0xff] %vm1658, %v1586
          %1996 = vst.msk [vmem:[#allocation2 + $0x8] sm:$0xff] %vm1658, %v1587
          %1997 = vst.msk [vmem:[#allocation2 + $0x10] sm:$0xff] %vm1658, %v1588
          %1998 = vst.msk [vmem:[#allocation2 + $0x18] sm:$0xff] %vm1658, %v1589
          %v1999 = vld [vmem:[#allocation4] sm:$0xff]
          %v2000 = vld [vmem:[#allocation4 + $0x8] sm:$0xff]
          %v2001 = vld [vmem:[#allocation4 + $0x10] sm:$0xff]
          %v2002 = vld [vmem:[#allocation4 + $0x18] sm:$0xff]
          %v2003 = vld [vmem:[#allocation3] sm:$0xff]
          %v2004 = vld [vmem:[#allocation3 + $0x8] sm:$0xff]
          %v2005 = vld [vmem:[#allocation3 + $0x10] sm:$0xff]
          %v2006 = vld [vmem:[#allocation3 + $0x18] sm:$0xff]
          %v2007 = vrcp.pop %v2003
          %v2008 = vrcp.pop %v2004
          %v2009 = vrcp.pop %v2005
          %v2010 = vrcp.pop %v2006
          %2012 = vset.pattern.permute.xlu0 0
          %2013 = vperm.xlu0 %2012, %v2007
          %v2014 = vpop.permute.xlu0 %2013
          %2017 = vset.pattern.permute.xlu0 0
          %2018 = vperm.xlu0 %2017, %v2008
          %v2019 = vpop.permute.xlu0 %2018
          %2022 = vset.pattern.permute.xlu0 0
          %2023 = vperm.xlu0 %2022, %v2009
          %v2024 = vpop.permute.xlu0 %2023
          %2027 = vset.pattern.permute.xlu0 0
          %2028 = vperm.xlu0 %2027, %v2010
          %v2029 = vpop.permute.xlu0 %2028
          %v2031 = vmul.f32 %v1999, %v2014
          %v2032 = vmul.f32 %v2000, %v2019
          %v2033 = vmul.f32 %v2001, %v2024
          %v2034 = vmul.f32 %v2002, %v2029
          %v2035 = vld [vmem:[#allocation14] sm:$0x1]
          %v2036 = vld [vmem:[#allocation13] sm:$0xff]
          %v2038 = vsel %vm1255, %v2031, 0
          %2040 = vmatprep.subr.mxu0 0.0
          %2041 = vmatpush1.msra.mxu0 %v2036
          %2042 = vmatprep.subr.mxu0 0.0
          %2043 = vmatpush1.msra.mxu0 0.0
          %2044 = vmatprep.subr.mxu0 0.0
          %2045 = vmatpush1.msra.mxu0 0.0
          %2046 = vmatprep.subr.mxu0 0.0
          %2047 = vmatpush1.msra.mxu0 0.0
          %2048 = vmatprep.subr.mxu0 0.0
          %2049 = vmatpush1.msra.mxu0 0.0
          %2050 = vmatprep.subr.mxu0 0.0
          %2051 = vmatpush1.msra.mxu0 0.0
          %2052 = vmatprep.subr.mxu0 0.0
          %2053 = vmatpush1.msra.mxu0 0.0
          %2054 = vmatprep.subr.mxu0 0.0
          %2055 = vmatpush1.msra.mxu0 0.0
          %2056 = vmatprep.subr.mxu0 0.0
          %2057 = vmatpush1.msra.mxu0 0.0
          %2058 = vmatprep.subr.mxu0 0.0
          %2059 = vmatpush1.msra.mxu0 0.0
          %2060 = vmatprep.subr.mxu0 0.0
          %2061 = vmatpush1.msra.mxu0 0.0
          %2062 = vmatprep.subr.mxu0 0.0
          %2063 = vmatpush1.msra.mxu0 0.0
          %2064 = vmatprep.subr.mxu0 0.0
          %2065 = vmatpush1.msra.mxu0 0.0
          %2066 = vmatprep.subr.mxu0 0.0
          %2067 = vmatpush1.msra.mxu0 0.0
          %2068 = vmatprep.subr.mxu0 0.0
          %2069 = vmatpush1.msra.mxu0 0.0
          %2070 = vmatprep.subr.mxu0 0.0
          %2071 = vmatpush1.msra.mxu0 0.0
          %2072 = vmatprep.subr.mxu0 0.0
          %2073 = vmatpush1.msra.mxu0 0.0
          %2074 = vmatprep.subr.mxu0 0.0
          %2075 = vmatpush1.msra.mxu0 0.0
          %2076 = vmatprep.subr.mxu0 0.0
          %2077 = vmatpush1.msra.mxu0 0.0
          %2078 = vmatprep.subr.mxu0 0.0
          %2079 = vmatpush1.msra.mxu0 0.0
          %2080 = vmatprep.subr.mxu0 0.0
          %2081 = vmatpush1.msra.mxu0 0.0
          %2082 = vmatprep.subr.mxu0 0.0
          %2083 = vmatpush1.msra.mxu0 0.0
          %2084 = vmatprep.subr.mxu0 0.0
          %2085 = vmatpush1.msra.mxu0 0.0
          %2086 = vmatprep.subr.mxu0 0.0
          %2087 = vmatpush1.msra.mxu0 0.0
          %2088 = vmatprep.subr.mxu0 0.0
          %2089 = vmatpush1.msra.mxu0 0.0
          %2090 = vmatprep.subr.mxu0 0.0
          %2091 = vmatpush1.msra.mxu0 0.0
          %2092 = vmatprep.subr.mxu0 0.0
          %2093 = vmatpush1.msra.mxu0 0.0
          %2094 = vmatprep.subr.mxu0 0.0
          %2095 = vmatpush1.msra.mxu0 0.0
          %2096 = vmatprep.subr.mxu0 0.0
          %2097 = vmatpush1.msra.mxu0 0.0
          %2098 = vmatprep.subr.mxu0 0.0
          %2099 = vmatpush1.msra.mxu0 0.0
          %2100 = vmatprep.subr.mxu0 0.0
          %2101 = vmatpush1.msra.mxu0 0.0
          %2102 = vmatprep.subr.mxu0 0.0
          %2103 = vmatpush1.msra.mxu0 0.0
          %2104 = vmatprep.mubr.f32.mxu0 0.0
          %2105 = vmatmul.mubr.f32.gmra.mrb[0].mxu0 %v2038
          %v2106 = vpop.f32.mrb[0].mxu0
          %v2107 = vadd.f32 0.0, %v2106
          %v2108 = vpop.f32.mrb[0].mxu0
          %2109 = vdwg.mxu0
          %v2111 = vlaneseq
          %v2112 = vshrl.u32 %v2111, 7
          %v2113 = vsub.s32 0, %v2112
          %v2114 = vrot.slane %v2035, %v2113
          %v2116 = vadd.f32 %v2114, %v2107
          %s2117 = scalar_lea.vmem [#allocation13], 8
          %v2118 = vld [vmem:[%s2117] sm:$0xff]
          %v2120 = vsel %vm1255, %v2032, 0
          %2122 = vmatprep.subr.mxu0 0.0
          %2123 = vmatpush1.msra.mxu0 %v2118
          %2124 = vmatprep.subr.mxu0 0.0
          %2125 = vmatpush1.msra.mxu0 0.0
          %2126 = vmatprep.subr.mxu0 0.0
          %2127 = vmatpush1.msra.mxu0 0.0
          %2128 = vmatprep.subr.mxu0 0.0
          %2129 = vmatpush1.msra.mxu0 0.0
          %2130 = vmatprep.subr.mxu0 0.0
          %2131 = vmatpush1.msra.mxu0 0.0
          %2132 = vmatprep.subr.mxu0 0.0
          %2133 = vmatpush1.msra.mxu0 0.0
          %2134 = vmatprep.subr.mxu0 0.0
          %2135 = vmatpush1.msra.mxu0 0.0
          %2136 = vmatprep.subr.mxu0 0.0
          %2137 = vmatpush1.msra.mxu0 0.0
          %2138 = vmatprep.subr.mxu0 0.0
          %2139 = vmatpush1.msra.mxu0 0.0
          %2140 = vmatprep.subr.mxu0 0.0
          %2141 = vmatpush1.msra.mxu0 0.0
          %2142 = vmatprep.subr.mxu0 0.0
          %2143 = vmatpush1.msra.mxu0 0.0
          %2144 = vmatprep.subr.mxu0 0.0
          %2145 = vmatpush1.msra.mxu0 0.0
          %2146 = vmatprep.subr.mxu0 0.0
          %2147 = vmatpush1.msra.mxu0 0.0
          %2148 = vmatprep.subr.mxu0 0.0
          %2149 = vmatpush1.msra.mxu0 0.0
          %2150 = vmatprep.subr.mxu0 0.0
          %2151 = vmatpush1.msra.mxu0 0.0
          %2152 = vmatprep.subr.mxu0 0.0
          %2153 = vmatpush1.msra.mxu0 0.0
          %2154 = vmatprep.subr.mxu0 0.0
          %2155 = vmatpush1.msra.mxu0 0.0
          %2156 = vmatprep.subr.mxu0 0.0
          %2157 = vmatpush1.msra.mxu0 0.0
          %2158 = vmatprep.subr.mxu0 0.0
          %2159 = vmatpush1.msra.mxu0 0.0
          %2160 = vmatprep.subr.mxu0 0.0
          %2161 = vmatpush1.msra.mxu0 0.0
          %2162 = vmatprep.subr.mxu0 0.0
          %2163 = vmatpush1.msra.mxu0 0.0
          %2164 = vmatprep.subr.mxu0 0.0
          %2165 = vmatpush1.msra.mxu0 0.0
          %2166 = vmatprep.subr.mxu0 0.0
          %2167 = vmatpush1.msra.mxu0 0.0
          %2168 = vmatprep.subr.mxu0 0.0
          %2169 = vmatpush1.msra.mxu0 0.0
          %2170 = vmatprep.subr.mxu0 0.0
          %2171 = vmatpush1.msra.mxu0 0.0
          %2172 = vmatprep.subr.mxu0 0.0
          %2173 = vmatpush1.msra.mxu0 0.0
          %2174 = vmatprep.subr.mxu0 0.0
          %2175 = vmatpush1.msra.mxu0 0.0
          %2176 = vmatprep.subr.mxu0 0.0
          %2177 = vmatpush1.msra.mxu0 0.0
          %2178 = vmatprep.subr.mxu0 0.0
          %2179 = vmatpush1.msra.mxu0 0.0
          %2180 = vmatprep.subr.mxu0 0.0
          %2181 = vmatpush1.msra.mxu0 0.0
          %2182 = vmatprep.subr.mxu0 0.0
          %2183 = vmatpush1.msra.mxu0 0.0
          %2184 = vmatprep.subr.mxu0 0.0
          %2185 = vmatpush1.msra.mxu0 0.0
          %2186 = vmatprep.mubr.f32.mxu0 0.0
          %2187 = vmatmul.mubr.f32.gmra.mrb[0].mxu0 %v2120
          %v2188 = vpop.f32.mrb[0].mxu0
          %v2189 = vadd.f32 0.0, %v2188
          %v2190 = vpop.f32.mrb[0].mxu0
          %2191 = vdwg.mxu0
          %v2192 = vadd.f32 %v2116, %v2189
          %s2193 = scalar_lea.vmem [#allocation13], 16
          %v2194 = vld [vmem:[%s2193] sm:$0xff]
          %v2196 = vsel %vm1255, %v2033, 0
          %2198 = vmatprep.subr.mxu0 0.0
          %2199 = vmatpush1.msra.mxu0 %v2194
          %2200 = vmatprep.subr.mxu0 0.0
          %2201 = vmatpush1.msra.mxu0 0.0
          %2202 = vmatprep.subr.mxu0 0.0
          %2203 = vmatpush1.msra.mxu0 0.0
          %2204 = vmatprep.subr.mxu0 0.0
          %2205 = vmatpush1.msra.mxu0 0.0
          %2206 = vmatprep.subr.mxu0 0.0
          %2207 = vmatpush1.msra.mxu0 0.0
          %2208 = vmatprep.subr.mxu0 0.0
          %2209 = vmatpush1.msra.mxu0 0.0
          %2210 = vmatprep.subr.mxu0 0.0
          %2211 = vmatpush1.msra.mxu0 0.0
          %2212 = vmatprep.subr.mxu0 0.0
          %2213 = vmatpush1.msra.mxu0 0.0
          %2214 = vmatprep.subr.mxu0 0.0
          %2215 = vmatpush1.msra.mxu0 0.0
          %2216 = vmatprep.subr.mxu0 0.0
          %2217 = vmatpush1.msra.mxu0 0.0
          %2218 = vmatprep.subr.mxu0 0.0
          %2219 = vmatpush1.msra.mxu0 0.0
          %2220 = vmatprep.subr.mxu0 0.0
          %2221 = vmatpush1.msra.mxu0 0.0
          %2222 = vmatprep.subr.mxu0 0.0
          %2223 = vmatpush1.msra.mxu0 0.0
          %2224 = vmatprep.subr.mxu0 0.0
          %2225 = vmatpush1.msra.mxu0 0.0
          %2226 = vmatprep.subr.mxu0 0.0
          %2227 = vmatpush1.msra.mxu0 0.0
          %2228 = vmatprep.subr.mxu0 0.0
          %2229 = vmatpush1.msra.mxu0 0.0
          %2230 = vmatprep.subr.mxu0 0.0
          %2231 = vmatpush1.msra.mxu0 0.0
          %2232 = vmatprep.subr.mxu0 0.0
          %2233 = vmatpush1.msra.mxu0 0.0
          %2234 = vmatprep.subr.mxu0 0.0
          %2235 = vmatpush1.msra.mxu0 0.0
          %2236 = vmatprep.subr.mxu0 0.0
          %2237 = vmatpush1.msra.mxu0 0.0
          %2238 = vmatprep.subr.mxu0 0.0
          %2239 = vmatpush1.msra.mxu0 0.0
          %2240 = vmatprep.subr.mxu0 0.0
          %2241 = vmatpush1.msra.mxu0 0.0
          %2242 = vmatprep.subr.mxu0 0.0
          %2243 = vmatpush1.msra.mxu0 0.0
          %2244 = vmatprep.subr.mxu0 0.0
          %2245 = vmatpush1.msra.mxu0 0.0
          %2246 = vmatprep.subr.mxu0 0.0
          %2247 = vmatpush1.msra.mxu0 0.0
          %2248 = vmatprep.subr.mxu0 0.0
          %2249 = vmatpush1.msra.mxu0 0.0
          %2250 = vmatprep.subr.mxu0 0.0
          %2251 = vmatpush1.msra.mxu0 0.0
          %2252 = vmatprep.subr.mxu0 0.0
          %2253 = vmatpush1.msra.mxu0 0.0
          %2254 = vmatprep.subr.mxu0 0.0
          %2255 = vmatpush1.msra.mxu0 0.0
          %2256 = vmatprep.subr.mxu0 0.0
          %2257 = vmatpush1.msra.mxu0 0.0
          %2258 = vmatprep.subr.mxu0 0.0
          %2259 = vmatpush1.msra.mxu0 0.0
          %2260 = vmatprep.subr.mxu0 0.0
          %2261 = vmatpush1.msra.mxu0 0.0
          %2262 = vmatprep.mubr.f32.mxu0 0.0
          %2263 = vmatmul.mubr.f32.gmra.mrb[0].mxu0 %v2196
          %v2264 = vpop.f32.mrb[0].mxu0
          %v2265 = vadd.f32 0.0, %v2264
          %v2266 = vpop.f32.mrb[0].mxu0
          %2267 = vdwg.mxu0
          %v2268 = vadd.f32 %v2192, %v2265
          %s2269 = scalar_lea.vmem [#allocation13], 24
          %v2270 = vld [vmem:[%s2269] sm:$0xff]
          %v2272 = vsel %vm1255, %v2034, 0
          %2274 = vmatprep.subr.mxu0 0.0
          %2275 = vmatpush1.msra.mxu0 %v2270
          %2276 = vmatprep.subr.mxu0 0.0
          %2277 = vmatpush1.msra.mxu0 0.0
          %2278 = vmatprep.subr.mxu0 0.0
          %2279 = vmatpush1.msra.mxu0 0.0
          %2280 = vmatprep.subr.mxu0 0.0
          %2281 = vmatpush1.msra.mxu0 0.0
          %2282 = vmatprep.subr.mxu0 0.0
          %2283 = vmatpush1.msra.mxu0 0.0
          %2284 = vmatprep.subr.mxu0 0.0
          %2285 = vmatpush1.msra.mxu0 0.0
          %2286 = vmatprep.subr.mxu0 0.0
          %2287 = vmatpush1.msra.mxu0 0.0
          %2288 = vmatprep.subr.mxu0 0.0
          %2289 = vmatpush1.msra.mxu0 0.0
          %2290 = vmatprep.subr.mxu0 0.0
          %2291 = vmatpush1.msra.mxu0 0.0
          %2292 = vmatprep.subr.mxu0 0.0
          %2293 = vmatpush1.msra.mxu0 0.0
          %2294 = vmatprep.subr.mxu0 0.0
          %2295 = vmatpush1.msra.mxu0 0.0
          %2296 = vmatprep.subr.mxu0 0.0
          %2297 = vmatpush1.msra.mxu0 0.0
          %2298 = vmatprep.subr.mxu0 0.0
          %2299 = vmatpush1.msra.mxu0 0.0
          %2300 = vmatprep.subr.mxu0 0.0
          %2301 = vmatpush1.msra.mxu0 0.0
          %2302 = vmatprep.subr.mxu0 0.0
          %2303 = vmatpush1.msra.mxu0 0.0
          %2304 = vmatprep.subr.mxu0 0.0
          %2305 = vmatpush1.msra.mxu0 0.0
          %2306 = vmatprep.subr.mxu0 0.0
          %2307 = vmatpush1.msra.mxu0 0.0
          %2308 = vmatprep.subr.mxu0 0.0
          %2309 = vmatpush1.msra.mxu0 0.0
          %2310 = vmatprep.subr.mxu0 0.0
          %2311 = vmatpush1.msra.mxu0 0.0
          %2312 = vmatprep.subr.mxu0 0.0
          %2313 = vmatpush1.msra.mxu0 0.0
          %2314 = vmatprep.subr.mxu0 0.0
          %2315 = vmatpush1.msra.mxu0 0.0
          %2316 = vmatprep.subr.mxu0 0.0
          %2317 = vmatpush1.msra.mxu0 0.0
          %2318 = vmatprep.subr.mxu0 0.0
          %2319 = vmatpush1.msra.mxu0 0.0
          %2320 = vmatprep.subr.mxu0 0.0
          %2321 = vmatpush1.msra.mxu0 0.0
          %2322 = vmatprep.subr.mxu0 0.0
          %2323 = vmatpush1.msra.mxu0 0.0
          %2324 = vmatprep.subr.mxu0 0.0
          %2325 = vmatpush1.msra.mxu0 0.0
          %2326 = vmatprep.subr.mxu0 0.0
          %2327 = vmatpush1.msra.mxu0 0.0
          %2328 = vmatprep.subr.mxu0 0.0
          %2329 = vmatpush1.msra.mxu0 0.0
          %2330 = vmatprep.subr.mxu0 0.0
          %2331 = vmatpush1.msra.mxu0 0.0
          %2332 = vmatprep.subr.mxu0 0.0
          %2333 = vmatpush1.msra.mxu0 0.0
          %2334 = vmatprep.subr.mxu0 0.0
          %2335 = vmatpush1.msra.mxu0 0.0
          %2336 = vmatprep.subr.mxu0 0.0
          %2337 = vmatpush1.msra.mxu0 0.0
          %2338 = vmatprep.mubr.f32.mxu0 0.0
          %2339 = vmatmul.mubr.f32.gmra.mrb[0].mxu0 %v2272
          %v2340 = vpop.f32.mrb[0].mxu0
          %v2341 = vadd.f32 0.0, %v2340
          %v2342 = vpop.f32.mrb[0].mxu0
          %2343 = vdwg.mxu0
          %v2344 = vadd.f32 %v2268, %v2341
          %vm2345 = vcmask 261120
          %2346 = vst.msk [vmem:[%s458] sm:$0xff] %vm2345, %v2344
        $region80: #{tpu_custom_call.1} parent=43 // pred_fallthru
          _
        %s2347 = sand.u32 %s225, 1
        %s2348 = scalar_lea.sflag [#allocation7], %s2347
        %s2349 = sand.u32 %s225, 1
        %s2350 = smul.addr %s2349, 8
        %s2351 = scalar_lea.vmem [#allocation16], %s2350
        // Predicated region
        $region81: #{tpu_custom_call.1} parent=43 // pred_check
          %p2352 = pneg %p235
        $region82: #{tpu_custom_call.1} parent=43 // pred_check_branch
          %2354 = sbr.rel (%p2352) target = $region84
        $region83: #{tpu_custom_call.1} parent=43 // pred_region
          %s2356 = ssub.s32 128, 128
          %2357 = vsyncadd %s2348, %s2356
          %s2358 = sadd.s32 %s36, %s35
          %s2359 = smul.addr %s2358, 128
          %s2360 = scalar_lea.hbm %s6, %s2359
          %s2362 = sshll.u32 %s2351, 4
          %s2363 = int_to_ptr.vmem [resolvable:$true] %s2362
          %2365 = dma.vmem_to_hbm [thread:$0]  %s2363, 128, %s2360, %s2348
        $region84: #{tpu_custom_call.1} parent=43 // pred_fallthru
          _
      $region44: #{tpu_custom_call.1} parent=5 // pred_fallthru
        _
      %p2366 = scmp.le.s32.totalorder 2, %s25
      // Predicated region
      $region85: #{tpu_custom_call.1} parent=5 // pred_check
        %p2367 = pneg %p2366
      $region86: #{tpu_custom_call.1} parent=5 // pred_check_branch
        %2369 = sbr.rel (%p2367) target = $region88
      $region87: #{tpu_custom_call.1} parent=5 // pred_region
        %s2370 = ssub.s32 %s25, 2
        // Predicated region
        $region89: #{tpu_custom_call.1} parent=87 // pred_check
          %p2371 = pneg %p241
        $region90: #{tpu_custom_call.1} parent=87 // pred_check_branch
          %2373 = sbr.rel (%p2371) target = $region92
        $region91: #{tpu_custom_call.1} parent=87 // pred_region
          %s2374 = sand.u32 %s226, 1
          %s2375 = scalar_lea.sflag [#allocation7], %s2374
          %s2376 = sand.u32 %s226, 1
          %s2377 = smul.addr %s2376, 8
          %s2378 = scalar_lea.vmem [#allocation16], %s2377
          %2379 = dma.done %s2375, 128
        $region92: #{tpu_custom_call.1} parent=87 // pred_fallthru
          _
      $region88: #{tpu_custom_call.1} parent=5 // pred_fallthru
        _
    $region6: #{tpu_custom_call.1} parent=1 // loop_footer
      %s29 = sadd.s32 1, %s25
    $region7: #{tpu_custom_call.1} parent=1 // loop_footer_branch
      %24 = sbr.rel target = $region3
    $region8: #{tpu_custom_call.1} parent=1 // loop_exit
      _
    %2380 = vsyncpa [#allocation6], 1
    %s2381 = scalar_lea.sflag [#allocation6], 1
    %2382 = vsyncpa %s2381, 1
    %2383 = vsyncpa [#allocation9], 1
    %s2384 = scalar_lea.sflag [#allocation9], 1
    %2385 = vsyncpa %s2384, 1
    %2386 = vsyncpa [#allocation12], 1
    %s2387 = scalar_lea.sflag [#allocation12], 1
    %2388 = vsyncpa %s2387, 1
    %2389 = vsyncpa [#allocation15], 1
    %2390 = vsyncpa [#allocation7], 1
    %s2391 = scalar_lea.sflag [#allocation7], 1
    %2392 = vsyncpa %s2391, 1

</llo_original>
